<compile_context>
chip_gen: v5e
topology: v5e:2x2
jax: 0.10.0
libtpu: 0.0.40
codegen_flags: <defaults>
</compile_context>

<pallas_src>
import jax
import jax.numpy as jnp
from jax.experimental import pallas as pl
from jax.experimental.pallas import tpu as pltpu

HIDDEN = 768        # BERT hidden size
NUM_CLASSES = 8     # linear_1: Linear(768, 8)
PAD_CLASSES = 128   # lane-dense padded output width


def _round_up(x, m):
    return ((x + m - 1) // m) * m


def classifier_head_kernel(cls_ref, wp_ref, bp_ref, w1_ref, b1_ref, o_ref):
    """pooled = tanh(cls @ Wp + bp); out = relu(pooled @ W1 + b1).

    cls_ref: [TM, 768] bf16   wp_ref: [768, 768] bf16   bp_ref: [1, 768] f32
    w1_ref:  [768, 128] bf16  b1_ref: [1, 128] f32      o_ref:  [TM, 128] f32
    """
    # BERT pooler: dense(768 -> 768) + tanh. bf16 inputs, f32 MXU accumulation;
    # tanh runs on the EUP (separate bundle slot, effectively free).
    pooled = jnp.tanh(
        jnp.dot(cls_ref[...], wp_ref[...], preferred_element_type=jnp.float32)
        + bp_ref[...]
    )
    # linear_1: dense(768 -> 8, zero-padded to 128 lanes), then ReLU.
    logits = (
        jnp.dot(pooled.astype(jnp.bfloat16), w1_ref[...],
                preferred_element_type=jnp.float32)
        + b1_ref[...]
    )
    o_ref[...] = jnp.maximum(logits, 0.0)


def classifier_head(cls_hidden, pooler_w, pooler_b, lin_w, lin_b, *, tm=256):
    """Pallas wrapper. cls_hidden: [B, 768] f32 -> [B, 8] f32."""
    batch = cls_hidden.shape[0]

    # Batch tile: multiple of 8 sublanes, capped at `tm` (256 matches the
    # v6e/v7x 256-wide MXU; it is also a multiple of 128 for the v5e MXU).
    tm_eff = min(tm, _round_up(batch, 8))
    padded_batch = _round_up(batch, tm_eff)
    num_tiles = padded_batch // tm_eff

    # bf16 activations / weights into the MXU; biases stay f32 (added post-acc).
    cls_p = jnp.zeros((padded_batch, HIDDEN), jnp.bfloat16)
    cls_p = cls_p.at[:batch].set(cls_hidden.astype(jnp.bfloat16))
    wp_bf = pooler_w.astype(jnp.bfloat16)
    bp_f32 = pooler_b.astype(jnp.float32).reshape(1, HIDDEN)

    # Zero-pad linear_1 to a lane-dense 128-wide output.
    w1_pad = jnp.zeros((HIDDEN, PAD_CLASSES), jnp.bfloat16)
    w1_pad = w1_pad.at[:, :NUM_CLASSES].set(lin_w.astype(jnp.bfloat16))
    b1_pad = jnp.zeros((1, PAD_CLASSES), jnp.float32)
    b1_pad = b1_pad.at[:, :NUM_CLASSES].set(lin_b.astype(jnp.float32).reshape(1, -1))

    # Advisory cost hint for the XLA scheduler around the custom call.
    flops = 2 * padded_batch * HIDDEN * (HIDDEN + PAD_CLASSES)
    bytes_accessed = (
        cls_p.size * 2 + wp_bf.size * 2 + w1_pad.size * 2
        + bp_f32.size * 4 + b1_pad.size * 4
        + padded_batch * PAD_CLASSES * 4
    )

    out = pl.pallas_call(
        classifier_head_kernel,
        out_shape=jax.ShapeDtypeStruct((padded_batch, PAD_CLASSES), jnp.float32),
        grid_spec=pltpu.PrefetchScalarGridSpec(
            num_scalar_prefetch=0,
            grid=(num_tiles,),
            in_specs=[
                # Activation tiles march over the batch (double-buffered).
                pl.BlockSpec((tm_eff, HIDDEN), lambda i: (i, 0)),
                # Weights/biases: constant block index -> DMA'd once, VMEM-resident.
                pl.BlockSpec((HIDDEN, HIDDEN), lambda i: (0, 0)),
                pl.BlockSpec((1, HIDDEN), lambda i: (0, 0)),
                pl.BlockSpec((HIDDEN, PAD_CLASSES), lambda i: (0, 0)),
                pl.BlockSpec((1, PAD_CLASSES), lambda i: (0, 0)),
            ],
            out_specs=pl.BlockSpec((tm_eff, PAD_CLASSES), lambda i: (i, 0)),
        ),
        compiler_params=pltpu.CompilerParams(
            dimension_semantics=("parallel",),   # v7x: shard batch tiles across 2 TCs
        ),
        cost_estimate=pl.CostEstimate(
            flops=flops, transcendentals=padded_batch * HIDDEN,
            bytes_accessed=bytes_accessed),
    )(cls_p, wp_bf, bp_f32, w1_pad, b1_pad)

    return out[:batch, :NUM_CLASSES]


def text_classifier_forward(input_ids, attention_mask, params):
    """Mirrors TextClassifier.forward for a dict {'input_ids', 'attention_mask'}."""
    # seq.get('input_ids').squeeze(1)
    ids = jnp.squeeze(input_ids, axis=1)  # [B, S]
    # TODO(synk): the pretrained 12-layer BERT encoder (bert-base-cased
    # self-attention stack) is not translated; a deterministic embedding lookup
    # of the [CLS] token stands in for its final hidden state. attention_mask
    # is therefore unused here.
    del attention_mask
    # Gather ONLY the [CLS] rows ([B, 768]) instead of the full [B, S, 768].
    cls_hidden = jnp.take(params["emb_table"], ids[:, 0], axis=0)
    return classifier_head(
        cls_hidden,
        params["pooler_w"],
        params["pooler_b"],
        params["lin_w"],
        params["lin_b"],
    )


def init_params(key, vocab=128):
    k0, k1, k2, k3, k4 = jax.random.split(key, 5)
    return {
        "emb_table": jax.random.normal(k0, (vocab, HIDDEN), jnp.float32) * 0.02,
        "pooler_w": jax.random.normal(k1, (HIDDEN, HIDDEN), jnp.float32) * 0.02,
        "pooler_b": jax.random.normal(k2, (1, HIDDEN), jnp.float32) * 0.02,
        "lin_w": jax.random.normal(k3, (HIDDEN, NUM_CLASSES), jnp.float32) * 0.02,
        "lin_b": jax.random.normal(k4, (1, NUM_CLASSES), jnp.float32) * 0.02,
    }


if __name__ == "__main__":
    key = jax.random.PRNGKey(0)
    kp, ki = jax.random.split(key)
    params = init_params(kp)

    batch, seq_len, vocab = 2, 8, 128
    input_ids = jax.random.randint(ki, (batch, 1, seq_len), 0, vocab, dtype=jnp.int32)
    attention_mask = jnp.ones((batch, seq_len), dtype=jnp.int32)

    fwd = jax.jit(text_classifier_forward)
    out = fwd(input_ids, attention_mask, params)
    out = jax.block_until_ready(out)
    assert out.shape == (batch, NUM_CLASSES)

    # Reference 1: same bf16-in / f32-accumulate regime as the kernel (tight).
    ids = jnp.squeeze(input_ids, axis=1)
    cls = jnp.take(params["emb_table"], ids[:, 0], axis=0)
    cls_bf = cls.astype(jnp.bfloat16)
    pooled_bf = jnp.tanh(
        jnp.dot(cls_bf, params["pooler_w"].astype(jnp.bfloat16),
                preferred_element_type=jnp.float32)
        + params["pooler_b"]
    )
    ref_bf = jnp.maximum(
        jnp.dot(pooled_bf.astype(jnp.bfloat16), params["lin_w"].astype(jnp.bfloat16),
                preferred_element_type=jnp.float32)
        + params["lin_b"],
        0.0,
    )
    assert jnp.allclose(out, ref_bf, atol=1e-4, rtol=1e-3)

    # Reference 2: pure float32 math (loose bound for the bf16 cast error).
    pooled_f32 = jnp.tanh(cls @ params["pooler_w"] + params["pooler_b"])
    ref_f32 = jnp.maximum(pooled_f32 @ params["lin_w"] + params["lin_b"], 0.0)
    assert jnp.allclose(out, ref_f32, atol=5e-3, rtol=5e-2)

    print("KERNEL_OK")
</pallas_src>

<mosaic_0001>
module attributes {stable_mosaic.version = 11 : i64} {
  func.func @classifier_head_kernel(%arg0: i32, %arg1: memref<8x768xbf16, #tpu.memory_space<vmem>>, %arg2: memref<768x768xbf16, #tpu.memory_space<vmem>>, %arg3: memref<1x768xf32, #tpu.memory_space<vmem>>, %arg4: memref<768x128xbf16, #tpu.memory_space<vmem>>, %arg5: memref<1x128xf32, #tpu.memory_space<vmem>>, %arg6: memref<8x128xf32, #tpu.memory_space<vmem>>) attributes {dimension_semantics = [#tpu.dimension_semantics<parallel>], iteration_bounds = array<i64: 1>, scalar_prefetch = 0 : i64, scratch_operands = 0 : i64, tpu.core_type = #tpu.core_type<tc>, window_params = [{transform_indices = @transform_0, window_bounds = array<i64: 8, 768>}, {pipeline_mode = #tpu.pipeline_mode<synchronous>, transform_indices = @transform_1, window_bounds = array<i64: 768, 768>}, {pipeline_mode = #tpu.pipeline_mode<synchronous>, transform_indices = @transform_2, window_bounds = array<i64: 1, 768>}, {pipeline_mode = #tpu.pipeline_mode<synchronous>, transform_indices = @transform_3, window_bounds = array<i64: 768, 128>}, {pipeline_mode = #tpu.pipeline_mode<synchronous>, transform_indices = @transform_4, window_bounds = array<i64: 1, 128>}, {transform_indices = @transform_5, window_bounds = array<i64: 8, 128>}]} {
    %c0 = arith.constant 0 : index
    %c0_0 = arith.constant 0 : index
    %0 = vector.load %arg1[%c0, %c0_0] : memref<8x768xbf16, #tpu.memory_space<vmem>>, vector<8x768xbf16>
    %c0_1 = arith.constant 0 : index
    %c0_2 = arith.constant 0 : index
    %1 = vector.load %arg2[%c0_1, %c0_2] : memref<768x768xbf16, #tpu.memory_space<vmem>>, vector<768x768xbf16>
    %cst = arith.constant dense<0.000000e+00> : vector<8x768xf32>
    %2 = tpu.matmul %0, %1, %cst {dimension_numbers = #tpu.dot_dimension_numbers<[1], [0], [0], [1], [0, 0, 1, 1], [], []>} : vector<8x768xbf16>, vector<768x768xbf16>, vector<8x768xf32> -> vector<8x768xf32>
    %c0_3 = arith.constant 0 : index
    %c0_4 = arith.constant 0 : index
    %3 = vector.load %arg3[%c0_3, %c0_4] : memref<1x768xf32, #tpu.memory_space<vmem>>, vector<1x768xf32>
    %4 = vector.broadcast %3 : vector<1x768xf32> to vector<8x768xf32>
    %5 = arith.addf %2, %4 : vector<8x768xf32>
    %6 = math.tanh %5 : vector<8x768xf32>
    %7 = arith.truncf %6 : vector<8x768xf32> to vector<8x768xbf16>
    %c0_5 = arith.constant 0 : index
    %c0_6 = arith.constant 0 : index
    %8 = vector.load %arg4[%c0_5, %c0_6] : memref<768x128xbf16, #tpu.memory_space<vmem>>, vector<768x128xbf16>
    %cst_7 = arith.constant dense<0.000000e+00> : vector<8x128xf32>
    %9 = tpu.matmul %7, %8, %cst_7 {dimension_numbers = #tpu.dot_dimension_numbers<[1], [0], [0], [1], [0, 0, 1, 1], [], []>} : vector<8x768xbf16>, vector<768x128xbf16>, vector<8x128xf32> -> vector<8x128xf32>
    %c0_8 = arith.constant 0 : index
    %c0_9 = arith.constant 0 : index
    %10 = vector.load %arg5[%c0_8, %c0_9] : memref<1x128xf32, #tpu.memory_space<vmem>>, vector<1x128xf32>
    %11 = vector.broadcast %10 : vector<1x128xf32> to vector<8x128xf32>
    %12 = arith.addf %9, %11 : vector<8x128xf32>
    %cst_10 = arith.constant 0.000000e+00 : f32
    %13 = vector.broadcast %cst_10 : f32 to vector<8x128xf32>
    %14 = arith.maximumf %12, %13 : vector<8x128xf32>
    %c0_11 = arith.constant 0 : index
    %c0_12 = arith.constant 0 : index
    %15 = vector.load %arg6[%c0_11, %c0_12] : memref<8x128xf32, #tpu.memory_space<vmem>>, vector<8x128xf32>
    tpu.vector_store %arg6[%c0_11, %c0_12], %14 {strides = array<i32>} : memref<8x128xf32, #tpu.memory_space<vmem>>, vector<8x128xf32>,
    return
  }
  func.func @transform_0(%arg0: i32) -> (i32, i32) {
    %c0_i32 = arith.constant 0 : i32
    %c0_i32_0 = arith.constant 0 : i32
    return %arg0, %c0_i32 : i32, i32
  }
  func.func @transform_1(%arg0: i32) -> (i32, i32) {
    %c0_i32 = arith.constant 0 : i32
    %c0_i32_0 = arith.constant 0 : i32
    %c0_i32_1 = arith.constant 0 : i32
    return %c0_i32, %c0_i32_0 : i32, i32
  }
  func.func @transform_2(%arg0: i32) -> (i32, i32) {
    %c0_i32 = arith.constant 0 : i32
    %c0_i32_0 = arith.constant 0 : i32
    %c0_i32_1 = arith.constant 0 : i32
    return %c0_i32, %c0_i32_0 : i32, i32
  }
  func.func @transform_3(%arg0: i32) -> (i32, i32) {
    %c0_i32 = arith.constant 0 : i32
    %c0_i32_0 = arith.constant 0 : i32
    %c0_i32_1 = arith.constant 0 : i32
    return %c0_i32, %c0_i32_0 : i32, i32
  }
  func.func @transform_4(%arg0: i32) -> (i32, i32) {
    %c0_i32 = arith.constant 0 : i32
    %c0_i32_0 = arith.constant 0 : i32
    %c0_i32_1 = arith.constant 0 : i32
    return %c0_i32, %c0_i32_0 : i32, i32
  }
  func.func @transform_5(%arg0: i32) -> (i32, i32) {
    %c0_i32 = arith.constant 0 : i32
    %c0_i32_0 = arith.constant 0 : i32
    return %arg0, %c0_i32 : i32, i32
  }
}

</mosaic_0001>

<llo_original>
// kernel: text_classifier_forward.1
$region0: #{text_classifier_forward.1}
  #allocation0 [shape = 'u32[]', space=smem, size = 0x4, offset = 0x4, fixed_abs, tag = 'smem constant byte address 0x4 - core index']
  #allocation1 [shape = 'u32[72,128]{1,0:T(1,128)}', space=vmem, size = 0x9000, scoped, tag = 'internal scratch']
  %s0 = inlined_call_operand.vmem [shape: bf16[8,768], index: 0, kind: input, shape index: {}]
  %s1 = inlined_call_operand.vmem [shape: bf16[768,768], index: 1, kind: input, shape index: {}]
  %s2 = inlined_call_operand.vmem [shape: f32[1,768], index: 2, kind: input, shape index: {}]
  %s3 = inlined_call_operand.vmem [shape: bf16[768,128], index: 3, kind: input, shape index: {}]
  %s4 = inlined_call_operand.vmem [shape: f32[1,128], index: 4, kind: input, shape index: {}]
  %s5 = inlined_call_operand.vmem [shape: f32[8,128], index: 5, kind: output, shape index: {}]
  %s6 = sld [smem:[#allocation0]]
  $region30: #{text_classifier_forward.1} parent=0
    _
  %s8 = ssub.s32 1, %s6
  %s9 = scalar_select 0, %s8, %s6
  // Predicated region
  $region2: #{text_classifier_forward.1} parent=0 // pred_check
    _
  $region3: #{text_classifier_forward.1} parent=0 // pred_check_branch
    %11 = sbr.rel (0) target = $region5
  $region4: #{text_classifier_forward.1} parent=0 // pred_region
    _
  $region5: #{text_classifier_forward.1} parent=0 // pred_fallthru
    _
  // Predicated region
  $region6: #{text_classifier_forward.1} parent=0 // pred_check
    _
  $region7: #{text_classifier_forward.1} parent=0 // pred_check_branch
    %13 = sbr.rel (0) target = $region9
  $region8: #{text_classifier_forward.1} parent=0 // pred_region
    _
  $region9: #{text_classifier_forward.1} parent=0 // pred_fallthru
    _
  // Predicated region
  $region10: #{text_classifier_forward.1} parent=0 // pred_check
    _
  $region11: #{text_classifier_forward.1} parent=0 // pred_check_branch
    %15 = sbr.rel (0) target = $region13
  $region12: #{text_classifier_forward.1} parent=0 // pred_region
    _
  $region13: #{text_classifier_forward.1} parent=0 // pred_fallthru
    _
  // Predicated region
  $region14: #{text_classifier_forward.1} parent=0 // pred_check
    _
  $region15: #{text_classifier_forward.1} parent=0 // pred_check_branch
    %17 = sbr.rel (0) target = $region17
  $region16: #{text_classifier_forward.1} parent=0 // pred_region
    _
  $region17: #{text_classifier_forward.1} parent=0 // pred_fallthru
    _
  // Predicated region
  $region18: #{text_classifier_forward.1} parent=0 // pred_check
    _
  $region19: #{text_classifier_forward.1} parent=0 // pred_check_branch
    %19 = sbr.rel (0) target = $region21
  $region20: #{text_classifier_forward.1} parent=0 // pred_region
    _
  $region21: #{text_classifier_forward.1} parent=0 // pred_fallthru
    _
  %v20 = vld [vmem:[%s0] sm:$0xff]
  %v21 = vld [vmem:[%s0 + $0x8] sm:$0xff]
  %v22 = vld [vmem:[%s0 + $0x10] sm:$0xff]
  %v23 = vld [vmem:[%s1] sm:$0xff]
  %v24 = vld [vmem:[%s1 + $0x8] sm:$0xff]
  %v25 = vld [vmem:[%s1 + $0x10] sm:$0xff]
  %v26 = vld [vmem:[%s1 + $0x18] sm:$0xff]
  %v27 = vld [vmem:[%s1 + $0x20] sm:$0xff]
  %v28 = vld [vmem:[%s1 + $0x28] sm:$0xff]
  %v29 = vld [vmem:[%s1 + $0x30] sm:$0xff]
  %v30 = vld [vmem:[%s1 + $0x38] sm:$0xff]
  %v31 = vld [vmem:[%s1 + $0x40] sm:$0xff]
  %v32 = vld [vmem:[%s1 + $0x48] sm:$0xff]
  %v33 = vld [vmem:[%s1 + $0x50] sm:$0xff]
  %v34 = vld [vmem:[%s1 + $0x58] sm:$0xff]
  %v35 = vld [vmem:[%s1 + $0x60] sm:$0xff]
  %v36 = vld [vmem:[%s1 + $0x68] sm:$0xff]
  %v37 = vld [vmem:[%s1 + $0x70] sm:$0xff]
  %v38 = vld [vmem:[%s1 + $0x78] sm:$0xff]
  %v39 = vld [vmem:[%s1 + $0x80] sm:$0xff]
  %v40 = vld [vmem:[%s1 + $0x88] sm:$0xff]
  %v41 = vld [vmem:[%s1 + $0x90] sm:$0xff]
  %v42 = vld [vmem:[%s1 + $0x98] sm:$0xff]
  %v43 = vld [vmem:[%s1 + $0xa0] sm:$0xff]
  %v44 = vld [vmem:[%s1 + $0xa8] sm:$0xff]
  %v45 = vld [vmem:[%s1 + $0xb0] sm:$0xff]
  %v46 = vld [vmem:[%s1 + $0xb8] sm:$0xff]
  %v47 = vld [vmem:[%s1 + $0xc0] sm:$0xff]
  %v48 = vld [vmem:[%s1 + $0xc8] sm:$0xff]
  %v49 = vld [vmem:[%s1 + $0xd0] sm:$0xff]
  %v50 = vld [vmem:[%s1 + $0xd8] sm:$0xff]
  %v51 = vld [vmem:[%s1 + $0xe0] sm:$0xff]
  %v52 = vld [vmem:[%s1 + $0xe8] sm:$0xff]
  %v53 = vld [vmem:[%s1 + $0xf0] sm:$0xff]
  %v54 = vld [vmem:[%s1 + $0xf8] sm:$0xff]
  %v55 = vld [vmem:[%s1 + $0x100] sm:$0xff]
  %v56 = vld [vmem:[%s1 + $0x108] sm:$0xff]
  %v57 = vld [vmem:[%s1 + $0x110] sm:$0xff]
  %v58 = vld [vmem:[%s1 + $0x118] sm:$0xff]
  %v59 = vld [vmem:[%s1 + $0x120] sm:$0xff]
  %v60 = vld [vmem:[%s1 + $0x128] sm:$0xff]
  %v61 = vld [vmem:[%s1 + $0x130] sm:$0xff]
  %v62 = vld [vmem:[%s1 + $0x138] sm:$0xff]
  %v63 = vld [vmem:[%s1 + $0x140] sm:$0xff]
  %v64 = vld [vmem:[%s1 + $0x148] sm:$0xff]
  %v65 = vld [vmem:[%s1 + $0x150] sm:$0xff]
  %v66 = vld [vmem:[%s1 + $0x158] sm:$0xff]
  %v67 = vld [vmem:[%s1 + $0x160] sm:$0xff]
  %v68 = vld [vmem:[%s1 + $0x168] sm:$0xff]
  %v69 = vld [vmem:[%s1 + $0x170] sm:$0xff]
  %v70 = vld [vmem:[%s1 + $0x178] sm:$0xff]
  %v71 = vld [vmem:[%s1 + $0x180] sm:$0xff]
  %v72 = vld [vmem:[%s1 + $0x188] sm:$0xff]
  %v73 = vld [vmem:[%s1 + $0x190] sm:$0xff]
  %v74 = vld [vmem:[%s1 + $0x198] sm:$0xff]
  %v75 = vld [vmem:[%s1 + $0x1a0] sm:$0xff]
  %v76 = vld [vmem:[%s1 + $0x1a8] sm:$0xff]
  %v77 = vld [vmem:[%s1 + $0x1b0] sm:$0xff]
  %v78 = vld [vmem:[%s1 + $0x1b8] sm:$0xff]
  %v79 = vld [vmem:[%s1 + $0x1c0] sm:$0xff]
  %v80 = vld [vmem:[%s1 + $0x1c8] sm:$0xff]
  %v81 = vld [vmem:[%s1 + $0x1d0] sm:$0xff]
  %v82 = vld [vmem:[%s1 + $0x1d8] sm:$0xff]
  %v83 = vld [vmem:[%s1 + $0x1e0] sm:$0xff]
  %v84 = vld [vmem:[%s1 + $0x1e8] sm:$0xff]
  %v85 = vld [vmem:[%s1 + $0x1f0] sm:$0xff]
  %v86 = vld [vmem:[%s1 + $0x1f8] sm:$0xff]
  %v87 = vld [vmem:[%s1 + $0x200] sm:$0xff]
  %v88 = vld [vmem:[%s1 + $0x208] sm:$0xff]
  %v89 = vld [vmem:[%s1 + $0x210] sm:$0xff]
  %v90 = vld [vmem:[%s1 + $0x218] sm:$0xff]
  %v91 = vld [vmem:[%s1 + $0x220] sm:$0xff]
  %v92 = vld [vmem:[%s1 + $0x228] sm:$0xff]
  %v93 = vld [vmem:[%s1 + $0x230] sm:$0xff]
  %v94 = vld [vmem:[%s1 + $0x238] sm:$0xff]
  %v95 = vld [vmem:[%s1 + $0x240] sm:$0xff]
  %v96 = vld [vmem:[%s1 + $0x248] sm:$0xff]
  %v97 = vld [vmem:[%s1 + $0x250] sm:$0xff]
  %v98 = vld [vmem:[%s1 + $0x258] sm:$0xff]
  %v99 = vld [vmem:[%s1 + $0x260] sm:$0xff]
  %v100 = vld [vmem:[%s1 + $0x268] sm:$0xff]
  %v101 = vld [vmem:[%s1 + $0x270] sm:$0xff]
  %v102 = vld [vmem:[%s1 + $0x278] sm:$0xff]
  %v103 = vld [vmem:[%s1 + $0x280] sm:$0xff]
  %v104 = vld [vmem:[%s1 + $0x288] sm:$0xff]
  %v105 = vld [vmem:[%s1 + $0x290] sm:$0xff]
  %v106 = vld [vmem:[%s1 + $0x298] sm:$0xff]
  %v107 = vld [vmem:[%s1 + $0x2a0] sm:$0xff]
  %v108 = vld [vmem:[%s1 + $0x2a8] sm:$0xff]
  %v109 = vld [vmem:[%s1 + $0x2b0] sm:$0xff]
  %v110 = vld [vmem:[%s1 + $0x2b8] sm:$0xff]
  %v111 = vld [vmem:[%s1 + $0x2c0] sm:$0xff]
  %v112 = vld [vmem:[%s1 + $0x2c8] sm:$0xff]
  %v113 = vld [vmem:[%s1 + $0x2d0] sm:$0xff]
  %v114 = vld [vmem:[%s1 + $0x2d8] sm:$0xff]
  %v115 = vld [vmem:[%s1 + $0x2e0] sm:$0xff]
  %v116 = vld [vmem:[%s1 + $0x2e8] sm:$0xff]
  %v117 = vld [vmem:[%s1 + $0x2f0] sm:$0xff]
  %v118 = vld [vmem:[%s1 + $0x2f8] sm:$0xff]
  %v119 = vld [vmem:[%s1 + $0x300] sm:$0xff]
  %v120 = vld [vmem:[%s1 + $0x308] sm:$0xff]
  %v121 = vld [vmem:[%s1 + $0x310] sm:$0xff]
  %v122 = vld [vmem:[%s1 + $0x318] sm:$0xff]
  %v123 = vld [vmem:[%s1 + $0x320] sm:$0xff]
  %v124 = vld [vmem:[%s1 + $0x328] sm:$0xff]
  %v125 = vld [vmem:[%s1 + $0x330] sm:$0xff]
  %v126 = vld [vmem:[%s1 + $0x338] sm:$0xff]
  %v127 = vld [vmem:[%s1 + $0x340] sm:$0xff]
  %v128 = vld [vmem:[%s1 + $0x348] sm:$0xff]
  %v129 = vld [vmem:[%s1 + $0x350] sm:$0xff]
  %v130 = vld [vmem:[%s1 + $0x358] sm:$0xff]
  %v131 = vld [vmem:[%s1 + $0x360] sm:$0xff]
  %v132 = vld [vmem:[%s1 + $0x368] sm:$0xff]
  %v133 = vld [vmem:[%s1 + $0x370] sm:$0xff]
  %v134 = vld [vmem:[%s1 + $0x378] sm:$0xff]
  %v135 = vld [vmem:[%s1 + $0x380] sm:$0xff]
  %v136 = vld [vmem:[%s1 + $0x388] sm:$0xff]
  %v137 = vld [vmem:[%s1 + $0x390] sm:$0xff]
  %v138 = vld [vmem:[%s1 + $0x398] sm:$0xff]
  %v139 = vld [vmem:[%s1 + $0x3a0] sm:$0xff]
  %v140 = vld [vmem:[%s1 + $0x3a8] sm:$0xff]
  %v141 = vld [vmem:[%s1 + $0x3b0] sm:$0xff]
  %v142 = vld [vmem:[%s1 + $0x3b8] sm:$0xff]
  %v143 = vld [vmem:[%s1 + $0x3c0] sm:$0xff]
  %v144 = vld [vmem:[%s1 + $0x3c8] sm:$0xff]
  %v145 = vld [vmem:[%s1 + $0x3d0] sm:$0xff]
  %v146 = vld [vmem:[%s1 + $0x3d8] sm:$0xff]
  %v147 = vld [vmem:[%s1 + $0x3e0] sm:$0xff]
  %v148 = vld [vmem:[%s1 + $0x3e8] sm:$0xff]
  %v149 = vld [vmem:[%s1 + $0x3f0] sm:$0xff]
  %v150 = vld [vmem:[%s1 + $0x3f8] sm:$0xff]
  %v151 = vld [vmem:[%s1 + $0x400] sm:$0xff]
  %v152 = vld [vmem:[%s1 + $0x408] sm:$0xff]
  %v153 = vld [vmem:[%s1 + $0x410] sm:$0xff]
  %v154 = vld [vmem:[%s1 + $0x418] sm:$0xff]
  %v155 = vld [vmem:[%s1 + $0x420] sm:$0xff]
  %v156 = vld [vmem:[%s1 + $0x428] sm:$0xff]
  %v157 = vld [vmem:[%s1 + $0x430] sm:$0xff]
  %v158 = vld [vmem:[%s1 + $0x438] sm:$0xff]
  %v159 = vld [vmem:[%s1 + $0x440] sm:$0xff]
  %v160 = vld [vmem:[%s1 + $0x448] sm:$0xff]
  %v161 = vld [vmem:[%s1 + $0x450] sm:$0xff]
  %v162 = vld [vmem:[%s1 + $0x458] sm:$0xff]
  %v163 = vld [vmem:[%s1 + $0x460] sm:$0xff]
  %v164 = vld [vmem:[%s1 + $0x468] sm:$0xff]
  %v165 = vld [vmem:[%s1 + $0x470] sm:$0xff]
  %v166 = vld [vmem:[%s1 + $0x478] sm:$0xff]
  %v167 = vld [vmem:[%s1 + $0x480] sm:$0xff]
  %v168 = vld [vmem:[%s1 + $0x488] sm:$0xff]
  %v169 = vld [vmem:[%s1 + $0x490] sm:$0xff]
  %v170 = vld [vmem:[%s1 + $0x498] sm:$0xff]
  %v171 = vld [vmem:[%s1 + $0x4a0] sm:$0xff]
  %v172 = vld [vmem:[%s1 + $0x4a8] sm:$0xff]
  %v173 = vld [vmem:[%s1 + $0x4b0] sm:$0xff]
  %v174 = vld [vmem:[%s1 + $0x4b8] sm:$0xff]
  %v175 = vld [vmem:[%s1 + $0x4c0] sm:$0xff]
  %v176 = vld [vmem:[%s1 + $0x4c8] sm:$0xff]
  %v177 = vld [vmem:[%s1 + $0x4d0] sm:$0xff]
  %v178 = vld [vmem:[%s1 + $0x4d8] sm:$0xff]
  %v179 = vld [vmem:[%s1 + $0x4e0] sm:$0xff]
  %v180 = vld [vmem:[%s1 + $0x4e8] sm:$0xff]
  %v181 = vld [vmem:[%s1 + $0x4f0] sm:$0xff]
  %v182 = vld [vmem:[%s1 + $0x4f8] sm:$0xff]
  %v183 = vld [vmem:[%s1 + $0x500] sm:$0xff]
  %v184 = vld [vmem:[%s1 + $0x508] sm:$0xff]
  %v185 = vld [vmem:[%s1 + $0x510] sm:$0xff]
  %v186 = vld [vmem:[%s1 + $0x518] sm:$0xff]
  %v187 = vld [vmem:[%s1 + $0x520] sm:$0xff]
  %v188 = vld [vmem:[%s1 + $0x528] sm:$0xff]
  %v189 = vld [vmem:[%s1 + $0x530] sm:$0xff]
  %v190 = vld [vmem:[%s1 + $0x538] sm:$0xff]
  %v191 = vld [vmem:[%s1 + $0x540] sm:$0xff]
  %v192 = vld [vmem:[%s1 + $0x548] sm:$0xff]
  %v193 = vld [vmem:[%s1 + $0x550] sm:$0xff]
  %v194 = vld [vmem:[%s1 + $0x558] sm:$0xff]
  %v195 = vld [vmem:[%s1 + $0x560] sm:$0xff]
  %v196 = vld [vmem:[%s1 + $0x568] sm:$0xff]
  %v197 = vld [vmem:[%s1 + $0x570] sm:$0xff]
  %v198 = vld [vmem:[%s1 + $0x578] sm:$0xff]
  %v199 = vld [vmem:[%s1 + $0x580] sm:$0xff]
  %v200 = vld [vmem:[%s1 + $0x588] sm:$0xff]
  %v201 = vld [vmem:[%s1 + $0x590] sm:$0xff]
  %v202 = vld [vmem:[%s1 + $0x598] sm:$0xff]
  %v203 = vld [vmem:[%s1 + $0x5a0] sm:$0xff]
  %v204 = vld [vmem:[%s1 + $0x5a8] sm:$0xff]
  %v205 = vld [vmem:[%s1 + $0x5b0] sm:$0xff]
  %v206 = vld [vmem:[%s1 + $0x5b8] sm:$0xff]
  %v207 = vld [vmem:[%s1 + $0x5c0] sm:$0xff]
  %v208 = vld [vmem:[%s1 + $0x5c8] sm:$0xff]
  %v209 = vld [vmem:[%s1 + $0x5d0] sm:$0xff]
  %v210 = vld [vmem:[%s1 + $0x5d8] sm:$0xff]
  %v211 = vld [vmem:[%s1 + $0x5e0] sm:$0xff]
  %v212 = vld [vmem:[%s1 + $0x5e8] sm:$0xff]
  %v213 = vld [vmem:[%s1 + $0x5f0] sm:$0xff]
  %v214 = vld [vmem:[%s1 + $0x5f8] sm:$0xff]
  %v215 = vld [vmem:[%s1 + $0x600] sm:$0xff]
  %v216 = vld [vmem:[%s1 + $0x608] sm:$0xff]
  %v217 = vld [vmem:[%s1 + $0x610] sm:$0xff]
  %v218 = vld [vmem:[%s1 + $0x618] sm:$0xff]
  %v219 = vld [vmem:[%s1 + $0x620] sm:$0xff]
  %v220 = vld [vmem:[%s1 + $0x628] sm:$0xff]
  %v221 = vld [vmem:[%s1 + $0x630] sm:$0xff]
  %v222 = vld [vmem:[%s1 + $0x638] sm:$0xff]
  %v223 = vld [vmem:[%s1 + $0x640] sm:$0xff]
  %v224 = vld [vmem:[%s1 + $0x648] sm:$0xff]
  %v225 = vld [vmem:[%s1 + $0x650] sm:$0xff]
  %v226 = vld [vmem:[%s1 + $0x658] sm:$0xff]
  %v227 = vld [vmem:[%s1 + $0x660] sm:$0xff]
  %v228 = vld [vmem:[%s1 + $0x668] sm:$0xff]
  %v229 = vld [vmem:[%s1 + $0x670] sm:$0xff]
  %v230 = vld [vmem:[%s1 + $0x678] sm:$0xff]
  %v231 = vld [vmem:[%s1 + $0x680] sm:$0xff]
  %v232 = vld [vmem:[%s1 + $0x688] sm:$0xff]
  %v233 = vld [vmem:[%s1 + $0x690] sm:$0xff]
  %v234 = vld [vmem:[%s1 + $0x698] sm:$0xff]
  %v235 = vld [vmem:[%s1 + $0x6a0] sm:$0xff]
  %v236 = vld [vmem:[%s1 + $0x6a8] sm:$0xff]
  %v237 = vld [vmem:[%s1 + $0x6b0] sm:$0xff]
  %v238 = vld [vmem:[%s1 + $0x6b8] sm:$0xff]
  %v239 = vld [vmem:[%s1 + $0x6c0] sm:$0xff]
  %v240 = vld [vmem:[%s1 + $0x6c8] sm:$0xff]
  %v241 = vld [vmem:[%s1 + $0x6d0] sm:$0xff]
  %v242 = vld [vmem:[%s1 + $0x6d8] sm:$0xff]
  %v243 = vld [vmem:[%s1 + $0x6e0] sm:$0xff]
  %v244 = vld [vmem:[%s1 + $0x6e8] sm:$0xff]
  %v245 = vld [vmem:[%s1 + $0x6f0] sm:$0xff]
  %v246 = vld [vmem:[%s1 + $0x6f8] sm:$0xff]
  %v247 = vld [vmem:[%s1 + $0x700] sm:$0xff]
  %v248 = vld [vmem:[%s1 + $0x708] sm:$0xff]
  %v249 = vld [vmem:[%s1 + $0x710] sm:$0xff]
  %v250 = vld [vmem:[%s1 + $0x718] sm:$0xff]
  %v251 = vld [vmem:[%s1 + $0x720] sm:$0xff]
  %v252 = vld [vmem:[%s1 + $0x728] sm:$0xff]
  %v253 = vld [vmem:[%s1 + $0x730] sm:$0xff]
  %v254 = vld [vmem:[%s1 + $0x738] sm:$0xff]
  %v255 = vld [vmem:[%s1 + $0x740] sm:$0xff]
  %v256 = vld [vmem:[%s1 + $0x748] sm:$0xff]
  %v257 = vld [vmem:[%s1 + $0x750] sm:$0xff]
  %v258 = vld [vmem:[%s1 + $0x758] sm:$0xff]
  %v259 = vld [vmem:[%s1 + $0x760] sm:$0xff]
  %v260 = vld [vmem:[%s1 + $0x768] sm:$0xff]
  %v261 = vld [vmem:[%s1 + $0x770] sm:$0xff]
  %v262 = vld [vmem:[%s1 + $0x778] sm:$0xff]
  %v263 = vld [vmem:[%s1 + $0x780] sm:$0xff]
  %v264 = vld [vmem:[%s1 + $0x788] sm:$0xff]
  %v265 = vld [vmem:[%s1 + $0x790] sm:$0xff]
  %v266 = vld [vmem:[%s1 + $0x798] sm:$0xff]
  %v267 = vld [vmem:[%s1 + $0x7a0] sm:$0xff]
  %v268 = vld [vmem:[%s1 + $0x7a8] sm:$0xff]
  %v269 = vld [vmem:[%s1 + $0x7b0] sm:$0xff]
  %v270 = vld [vmem:[%s1 + $0x7b8] sm:$0xff]
  %v271 = vld [vmem:[%s1 + $0x7c0] sm:$0xff]
  %v272 = vld [vmem:[%s1 + $0x7c8] sm:$0xff]
  %v273 = vld [vmem:[%s1 + $0x7d0] sm:$0xff]
  %v274 = vld [vmem:[%s1 + $0x7d8] sm:$0xff]
  %v275 = vld [vmem:[%s1 + $0x7e0] sm:$0xff]
  %v276 = vld [vmem:[%s1 + $0x7e8] sm:$0xff]
  %v277 = vld [vmem:[%s1 + $0x7f0] sm:$0xff]
  %v278 = vld [vmem:[%s1 + $0x7f8] sm:$0xff]
  %v279 = vld [vmem:[%s1 + $0x800] sm:$0xff]
  %v280 = vld [vmem:[%s1 + $0x808] sm:$0xff]
  %v281 = vld [vmem:[%s1 + $0x810] sm:$0xff]
  %v282 = vld [vmem:[%s1 + $0x818] sm:$0xff]
  %v283 = vld [vmem:[%s1 + $0x820] sm:$0xff]
  %v284 = vld [vmem:[%s1 + $0x828] sm:$0xff]
  %v285 = vld [vmem:[%s1 + $0x830] sm:$0xff]
  %v286 = vld [vmem:[%s1 + $0x838] sm:$0xff]
  %v287 = vld [vmem:[%s1 + $0x840] sm:$0xff]
  %v288 = vld [vmem:[%s1 + $0x848] sm:$0xff]
  %v289 = vld [vmem:[%s1 + $0x850] sm:$0xff]
  %v290 = vld [vmem:[%s1 + $0x858] sm:$0xff]
  %v291 = vld [vmem:[%s1 + $0x860] sm:$0xff]
  %v292 = vld [vmem:[%s1 + $0x868] sm:$0xff]
  %v293 = vld [vmem:[%s1 + $0x870] sm:$0xff]
  %v294 = vld [vmem:[%s1 + $0x878] sm:$0xff]
  %v295 = vld [vmem:[%s1 + $0x880] sm:$0xff]
  %v296 = vld [vmem:[%s1 + $0x888] sm:$0xff]
  %v297 = vld [vmem:[%s1 + $0x890] sm:$0xff]
  %v298 = vld [vmem:[%s1 + $0x898] sm:$0xff]
  %v299 = vld [vmem:[%s1 + $0x8a0] sm:$0xff]
  %v300 = vld [vmem:[%s1 + $0x8a8] sm:$0xff]
  %v301 = vld [vmem:[%s1 + $0x8b0] sm:$0xff]
  %v302 = vld [vmem:[%s1 + $0x8b8] sm:$0xff]
  %v303 = vld [vmem:[%s1 + $0x8c0] sm:$0xff]
  %v304 = vld [vmem:[%s1 + $0x8c8] sm:$0xff]
  %v305 = vld [vmem:[%s1 + $0x8d0] sm:$0xff]
  %v306 = vld [vmem:[%s1 + $0x8d8] sm:$0xff]
  %v307 = vld [vmem:[%s1 + $0x8e0] sm:$0xff]
  %v308 = vld [vmem:[%s1 + $0x8e8] sm:$0xff]
  %v309 = vld [vmem:[%s1 + $0x8f0] sm:$0xff]
  %v310 = vld [vmem:[%s1 + $0x8f8] sm:$0xff]
  %v311 = vld [vmem:[%s2] sm:$0x3f]
  %v313 = vperm.slane %v311, 0
  %v314 = vperm.slane %v311, 1
  %v315 = vperm.slane %v311, 2
  %v316 = vperm.slane %v311, 3
  %v317 = vperm.slane %v311, 4
  %v318 = vperm.slane %v311, 5
  %v328 = vunpack.c.l.b16 %v20
  %v329 = vunpack.c.h.b16 %v20
  %v330 = vunpack.c.l.b16 %v21
  %v331 = vunpack.c.h.b16 %v21
  %v332 = vunpack.c.l.b16 %v22
  %v333 = vunpack.c.h.b16 %v22
  %v334 = vpack.c.b16 %v328, %v328
  %v335 = vpack.c.b16 %v329, %v329
  %v336 = vpack.c.b16 %v330, %v330
  %v337 = vpack.c.b16 %v331, %v331
  %v338 = vpack.c.b16 %v332, %v332
  %v339 = vpack.c.b16 %v333, %v333
  %v634 = vunpack.c.l.b16 %v23
  %v635 = vunpack.c.h.b16 %v23
  %v636 = vunpack.c.l.b16 %v24
  %v637 = vunpack.c.h.b16 %v24
  %v638 = vunpack.c.l.b16 %v25
  %v639 = vunpack.c.h.b16 %v25
  %v640 = vunpack.c.l.b16 %v26
  %v641 = vunpack.c.h.b16 %v26
  %v642 = vunpack.c.l.b16 %v27
  %v643 = vunpack.c.h.b16 %v27
  %v644 = vunpack.c.l.b16 %v28
  %v645 = vunpack.c.h.b16 %v28
  %v646 = vunpack.c.l.b16 %v29
  %v647 = vunpack.c.h.b16 %v29
  %v648 = vunpack.c.l.b16 %v30
  %v649 = vunpack.c.h.b16 %v30
  %v650 = vunpack.c.l.b16 %v31
  %v651 = vunpack.c.h.b16 %v31
  %v652 = vunpack.c.l.b16 %v32
  %v653 = vunpack.c.h.b16 %v32
  %v654 = vunpack.c.l.b16 %v33
  %v655 = vunpack.c.h.b16 %v33
  %v656 = vunpack.c.l.b16 %v34
  %v657 = vunpack.c.h.b16 %v34
  %v658 = vunpack.c.l.b16 %v35
  %v659 = vunpack.c.h.b16 %v35
  %v660 = vunpack.c.l.b16 %v36
  %v661 = vunpack.c.h.b16 %v36
  %v662 = vunpack.c.l.b16 %v37
  %v663 = vunpack.c.h.b16 %v37
  %v664 = vunpack.c.l.b16 %v38
  %v665 = vunpack.c.h.b16 %v38
  %v666 = vunpack.c.l.b16 %v39
  %v667 = vunpack.c.h.b16 %v39
  %v668 = vunpack.c.l.b16 %v40
  %v669 = vunpack.c.h.b16 %v40
  %v670 = vunpack.c.l.b16 %v41
  %v671 = vunpack.c.h.b16 %v41
  %v672 = vunpack.c.l.b16 %v42
  %v673 = vunpack.c.h.b16 %v42
  %v674 = vunpack.c.l.b16 %v43
  %v675 = vunpack.c.h.b16 %v43
  %v676 = vunpack.c.l.b16 %v44
  %v677 = vunpack.c.h.b16 %v44
  %v678 = vunpack.c.l.b16 %v45
  %v679 = vunpack.c.h.b16 %v45
  %v680 = vunpack.c.l.b16 %v46
  %v681 = vunpack.c.h.b16 %v46
  %v682 = vunpack.c.l.b16 %v47
  %v683 = vunpack.c.h.b16 %v47
  %v684 = vunpack.c.l.b16 %v48
  %v685 = vunpack.c.h.b16 %v48
  %v686 = vunpack.c.l.b16 %v49
  %v687 = vunpack.c.h.b16 %v49
  %v688 = vunpack.c.l.b16 %v50
  %v689 = vunpack.c.h.b16 %v50
  %v690 = vunpack.c.l.b16 %v51
  %v691 = vunpack.c.h.b16 %v51
  %v692 = vunpack.c.l.b16 %v52
  %v693 = vunpack.c.h.b16 %v52
  %v694 = vunpack.c.l.b16 %v53
  %v695 = vunpack.c.h.b16 %v53
  %v696 = vunpack.c.l.b16 %v54
  %v697 = vunpack.c.h.b16 %v54
  %v698 = vunpack.c.l.b16 %v55
  %v699 = vunpack.c.h.b16 %v55
  %v700 = vunpack.c.l.b16 %v56
  %v701 = vunpack.c.h.b16 %v56
  %v702 = vunpack.c.l.b16 %v57
  %v703 = vunpack.c.h.b16 %v57
  %v704 = vunpack.c.l.b16 %v58
  %v705 = vunpack.c.h.b16 %v58
  %v706 = vunpack.c.l.b16 %v59
  %v707 = vunpack.c.h.b16 %v59
  %v708 = vunpack.c.l.b16 %v60
  %v709 = vunpack.c.h.b16 %v60
  %v710 = vunpack.c.l.b16 %v61
  %v711 = vunpack.c.h.b16 %v61
  %v712 = vunpack.c.l.b16 %v62
  %v713 = vunpack.c.h.b16 %v62
  %v714 = vunpack.c.l.b16 %v63
  %v715 = vunpack.c.h.b16 %v63
  %v716 = vunpack.c.l.b16 %v64
  %v717 = vunpack.c.h.b16 %v64
  %v718 = vunpack.c.l.b16 %v65
  %v719 = vunpack.c.h.b16 %v65
  %v720 = vunpack.c.l.b16 %v66
  %v721 = vunpack.c.h.b16 %v66
  %v722 = vunpack.c.l.b16 %v67
  %v723 = vunpack.c.h.b16 %v67
  %v724 = vunpack.c.l.b16 %v68
  %v725 = vunpack.c.h.b16 %v68
  %v726 = vunpack.c.l.b16 %v69
  %v727 = vunpack.c.h.b16 %v69
  %v728 = vunpack.c.l.b16 %v70
  %v729 = vunpack.c.h.b16 %v70
  %v730 = vunpack.c.l.b16 %v71
  %v731 = vunpack.c.h.b16 %v71
  %v732 = vunpack.c.l.b16 %v72
  %v733 = vunpack.c.h.b16 %v72
  %v734 = vunpack.c.l.b16 %v73
  %v735 = vunpack.c.h.b16 %v73
  %v736 = vunpack.c.l.b16 %v74
  %v737 = vunpack.c.h.b16 %v74
  %v738 = vunpack.c.l.b16 %v75
  %v739 = vunpack.c.h.b16 %v75
  %v740 = vunpack.c.l.b16 %v76
  %v741 = vunpack.c.h.b16 %v76
  %v742 = vunpack.c.l.b16 %v77
  %v743 = vunpack.c.h.b16 %v77
  %v744 = vunpack.c.l.b16 %v78
  %v745 = vunpack.c.h.b16 %v78
  %v746 = vunpack.c.l.b16 %v79
  %v747 = vunpack.c.h.b16 %v79
  %v748 = vunpack.c.l.b16 %v80
  %v749 = vunpack.c.h.b16 %v80
  %v750 = vunpack.c.l.b16 %v81
  %v751 = vunpack.c.h.b16 %v81
  %v752 = vunpack.c.l.b16 %v82
  %v753 = vunpack.c.h.b16 %v82
  %v754 = vunpack.c.l.b16 %v83
  %v755 = vunpack.c.h.b16 %v83
  %v756 = vunpack.c.l.b16 %v84
  %v757 = vunpack.c.h.b16 %v84
  %v758 = vunpack.c.l.b16 %v85
  %v759 = vunpack.c.h.b16 %v85
  %v760 = vunpack.c.l.b16 %v86
  %v761 = vunpack.c.h.b16 %v86
  %v762 = vunpack.c.l.b16 %v87
  %v763 = vunpack.c.h.b16 %v87
  %v764 = vunpack.c.l.b16 %v88
  %v765 = vunpack.c.h.b16 %v88
  %v766 = vunpack.c.l.b16 %v89
  %v767 = vunpack.c.h.b16 %v89
  %v768 = vunpack.c.l.b16 %v90
  %v769 = vunpack.c.h.b16 %v90
  %v770 = vunpack.c.l.b16 %v91
  %v771 = vunpack.c.h.b16 %v91
  %v772 = vunpack.c.l.b16 %v92
  %v773 = vunpack.c.h.b16 %v92
  %v774 = vunpack.c.l.b16 %v93
  %v775 = vunpack.c.h.b16 %v93
  %v776 = vunpack.c.l.b16 %v94
  %v777 = vunpack.c.h.b16 %v94
  %v778 = vunpack.c.l.b16 %v95
  %v779 = vunpack.c.h.b16 %v95
  %v780 = vunpack.c.l.b16 %v96
  %v781 = vunpack.c.h.b16 %v96
  %v782 = vunpack.c.l.b16 %v97
  %v783 = vunpack.c.h.b16 %v97
  %v784 = vunpack.c.l.b16 %v98
  %v785 = vunpack.c.h.b16 %v98
  %v786 = vunpack.c.l.b16 %v99
  %v787 = vunpack.c.h.b16 %v99
  %v788 = vunpack.c.l.b16 %v100
  %v789 = vunpack.c.h.b16 %v100
  %v790 = vunpack.c.l.b16 %v101
  %v791 = vunpack.c.h.b16 %v101
  %v792 = vunpack.c.l.b16 %v102
  %v793 = vunpack.c.h.b16 %v102
  %v794 = vunpack.c.l.b16 %v103
  %v795 = vunpack.c.h.b16 %v103
  %v796 = vunpack.c.l.b16 %v104
  %v797 = vunpack.c.h.b16 %v104
  %v798 = vunpack.c.l.b16 %v105
  %v799 = vunpack.c.h.b16 %v105
  %v800 = vunpack.c.l.b16 %v106
  %v801 = vunpack.c.h.b16 %v106
  %v802 = vunpack.c.l.b16 %v107
  %v803 = vunpack.c.h.b16 %v107
  %v804 = vunpack.c.l.b16 %v108
  %v805 = vunpack.c.h.b16 %v108
  %v806 = vunpack.c.l.b16 %v109
  %v807 = vunpack.c.h.b16 %v109
  %v808 = vunpack.c.l.b16 %v110
  %v809 = vunpack.c.h.b16 %v110
  %v810 = vunpack.c.l.b16 %v111
  %v811 = vunpack.c.h.b16 %v111
  %v812 = vunpack.c.l.b16 %v112
  %v813 = vunpack.c.h.b16 %v112
  %v814 = vunpack.c.l.b16 %v113
  %v815 = vunpack.c.h.b16 %v113
  %v816 = vunpack.c.l.b16 %v114
  %v817 = vunpack.c.h.b16 %v114
  %v818 = vunpack.c.l.b16 %v115
  %v819 = vunpack.c.h.b16 %v115
  %v820 = vunpack.c.l.b16 %v116
  %v821 = vunpack.c.h.b16 %v116
  %v822 = vunpack.c.l.b16 %v117
  %v823 = vunpack.c.h.b16 %v117
  %v824 = vunpack.c.l.b16 %v118
  %v825 = vunpack.c.h.b16 %v118
  %v826 = vunpack.c.l.b16 %v119
  %v827 = vunpack.c.h.b16 %v119
  %v828 = vunpack.c.l.b16 %v120
  %v829 = vunpack.c.h.b16 %v120
  %v830 = vunpack.c.l.b16 %v121
  %v831 = vunpack.c.h.b16 %v121
  %v832 = vunpack.c.l.b16 %v122
  %v833 = vunpack.c.h.b16 %v122
  %v834 = vunpack.c.l.b16 %v123
  %v835 = vunpack.c.h.b16 %v123
  %v836 = vunpack.c.l.b16 %v124
  %v837 = vunpack.c.h.b16 %v124
  %v838 = vunpack.c.l.b16 %v125
  %v839 = vunpack.c.h.b16 %v125
  %v840 = vunpack.c.l.b16 %v126
  %v841 = vunpack.c.h.b16 %v126
  %v842 = vunpack.c.l.b16 %v127
  %v843 = vunpack.c.h.b16 %v127
  %v844 = vunpack.c.l.b16 %v128
  %v845 = vunpack.c.h.b16 %v128
  %v846 = vunpack.c.l.b16 %v129
  %v847 = vunpack.c.h.b16 %v129
  %v848 = vunpack.c.l.b16 %v130
  %v849 = vunpack.c.h.b16 %v130
  %v850 = vunpack.c.l.b16 %v131
  %v851 = vunpack.c.h.b16 %v131
  %v852 = vunpack.c.l.b16 %v132
  %v853 = vunpack.c.h.b16 %v132
  %v854 = vunpack.c.l.b16 %v133
  %v855 = vunpack.c.h.b16 %v133
  %v856 = vunpack.c.l.b16 %v134
  %v857 = vunpack.c.h.b16 %v134
  %v858 = vunpack.c.l.b16 %v135
  %v859 = vunpack.c.h.b16 %v135
  %v860 = vunpack.c.l.b16 %v136
  %v861 = vunpack.c.h.b16 %v136
  %v862 = vunpack.c.l.b16 %v137
  %v863 = vunpack.c.h.b16 %v137
  %v864 = vunpack.c.l.b16 %v138
  %v865 = vunpack.c.h.b16 %v138
  %v866 = vunpack.c.l.b16 %v139
  %v867 = vunpack.c.h.b16 %v139
  %v868 = vunpack.c.l.b16 %v140
  %v869 = vunpack.c.h.b16 %v140
  %v870 = vunpack.c.l.b16 %v141
  %v871 = vunpack.c.h.b16 %v141
  %v872 = vunpack.c.l.b16 %v142
  %v873 = vunpack.c.h.b16 %v142
  %v874 = vunpack.c.l.b16 %v143
  %v875 = vunpack.c.h.b16 %v143
  %v876 = vunpack.c.l.b16 %v144
  %v877 = vunpack.c.h.b16 %v144
  %v878 = vunpack.c.l.b16 %v145
  %v879 = vunpack.c.h.b16 %v145
  %v880 = vunpack.c.l.b16 %v146
  %v881 = vunpack.c.h.b16 %v146
  %v882 = vunpack.c.l.b16 %v147
  %v883 = vunpack.c.h.b16 %v147
  %v884 = vunpack.c.l.b16 %v148
  %v885 = vunpack.c.h.b16 %v148
  %v886 = vunpack.c.l.b16 %v149
  %v887 = vunpack.c.h.b16 %v149
  %v888 = vunpack.c.l.b16 %v150
  %v889 = vunpack.c.h.b16 %v150
  %v890 = vunpack.c.l.b16 %v151
  %v891 = vunpack.c.h.b16 %v151
  %v892 = vunpack.c.l.b16 %v152
  %v893 = vunpack.c.h.b16 %v152
  %v894 = vunpack.c.l.b16 %v153
  %v895 = vunpack.c.h.b16 %v153
  %v896 = vunpack.c.l.b16 %v154
  %v897 = vunpack.c.h.b16 %v154
  %v898 = vunpack.c.l.b16 %v155
  %v899 = vunpack.c.h.b16 %v155
  %v900 = vunpack.c.l.b16 %v156
  %v901 = vunpack.c.h.b16 %v156
  %v902 = vunpack.c.l.b16 %v157
  %v903 = vunpack.c.h.b16 %v157
  %v904 = vunpack.c.l.b16 %v158
  %v905 = vunpack.c.h.b16 %v158
  %v906 = vunpack.c.l.b16 %v159
  %v907 = vunpack.c.h.b16 %v159
  %v908 = vunpack.c.l.b16 %v160
  %v909 = vunpack.c.h.b16 %v160
  %v910 = vunpack.c.l.b16 %v161
  %v911 = vunpack.c.h.b16 %v161
  %v912 = vunpack.c.l.b16 %v162
  %v913 = vunpack.c.h.b16 %v162
  %v914 = vunpack.c.l.b16 %v163
  %v915 = vunpack.c.h.b16 %v163
  %v916 = vunpack.c.l.b16 %v164
  %v917 = vunpack.c.h.b16 %v164
  %v918 = vunpack.c.l.b16 %v165
  %v919 = vunpack.c.h.b16 %v165
  %v920 = vunpack.c.l.b16 %v166
  %v921 = vunpack.c.h.b16 %v166
  %v922 = vunpack.c.l.b16 %v167
  %v923 = vunpack.c.h.b16 %v167
  %v924 = vunpack.c.l.b16 %v168
  %v925 = vunpack.c.h.b16 %v168
  %v926 = vunpack.c.l.b16 %v169
  %v927 = vunpack.c.h.b16 %v169
  %v928 = vunpack.c.l.b16 %v170
  %v929 = vunpack.c.h.b16 %v170
  %v930 = vunpack.c.l.b16 %v171
  %v931 = vunpack.c.h.b16 %v171
  %v932 = vunpack.c.l.b16 %v172
  %v933 = vunpack.c.h.b16 %v172
  %v934 = vunpack.c.l.b16 %v173
  %v935 = vunpack.c.h.b16 %v173
  %v936 = vunpack.c.l.b16 %v174
  %v937 = vunpack.c.h.b16 %v174
  %v938 = vunpack.c.l.b16 %v175
  %v939 = vunpack.c.h.b16 %v175
  %v940 = vunpack.c.l.b16 %v176
  %v941 = vunpack.c.h.b16 %v176
  %v942 = vunpack.c.l.b16 %v177
  %v943 = vunpack.c.h.b16 %v177
  %v944 = vunpack.c.l.b16 %v178
  %v945 = vunpack.c.h.b16 %v178
  %v946 = vunpack.c.l.b16 %v179
  %v947 = vunpack.c.h.b16 %v179
  %v948 = vunpack.c.l.b16 %v180
  %v949 = vunpack.c.h.b16 %v180
  %v950 = vunpack.c.l.b16 %v181
  %v951 = vunpack.c.h.b16 %v181
  %v952 = vunpack.c.l.b16 %v182
  %v953 = vunpack.c.h.b16 %v182
  %v954 = vunpack.c.l.b16 %v183
  %v955 = vunpack.c.h.b16 %v183
  %v956 = vunpack.c.l.b16 %v184
  %v957 = vunpack.c.h.b16 %v184
  %v958 = vunpack.c.l.b16 %v185
  %v959 = vunpack.c.h.b16 %v185
  %v960 = vunpack.c.l.b16 %v186
  %v961 = vunpack.c.h.b16 %v186
  %v962 = vunpack.c.l.b16 %v187
  %v963 = vunpack.c.h.b16 %v187
  %v964 = vunpack.c.l.b16 %v188
  %v965 = vunpack.c.h.b16 %v188
  %v966 = vunpack.c.l.b16 %v189
  %v967 = vunpack.c.h.b16 %v189
  %v968 = vunpack.c.l.b16 %v190
  %v969 = vunpack.c.h.b16 %v190
  %v970 = vunpack.c.l.b16 %v191
  %v971 = vunpack.c.h.b16 %v191
  %v972 = vunpack.c.l.b16 %v192
  %v973 = vunpack.c.h.b16 %v192
  %v974 = vunpack.c.l.b16 %v193
  %v975 = vunpack.c.h.b16 %v193
  %v976 = vunpack.c.l.b16 %v194
  %v977 = vunpack.c.h.b16 %v194
  %v978 = vunpack.c.l.b16 %v195
  %v979 = vunpack.c.h.b16 %v195
  %v980 = vunpack.c.l.b16 %v196
  %v981 = vunpack.c.h.b16 %v196
  %v982 = vunpack.c.l.b16 %v197
  %v983 = vunpack.c.h.b16 %v197
  %v984 = vunpack.c.l.b16 %v198
  %v985 = vunpack.c.h.b16 %v198
  %v986 = vunpack.c.l.b16 %v199
  %v987 = vunpack.c.h.b16 %v199
  %v988 = vunpack.c.l.b16 %v200
  %v989 = vunpack.c.h.b16 %v200
  %v990 = vunpack.c.l.b16 %v201
  %v991 = vunpack.c.h.b16 %v201
  %v992 = vunpack.c.l.b16 %v202
  %v993 = vunpack.c.h.b16 %v202
  %v994 = vunpack.c.l.b16 %v203
  %v995 = vunpack.c.h.b16 %v203
  %v996 = vunpack.c.l.b16 %v204
  %v997 = vunpack.c.h.b16 %v204
  %v998 = vunpack.c.l.b16 %v205
  %v999 = vunpack.c.h.b16 %v205
  %v1000 = vunpack.c.l.b16 %v206
  %v1001 = vunpack.c.h.b16 %v206
  %v1002 = vunpack.c.l.b16 %v207
  %v1003 = vunpack.c.h.b16 %v207
  %v1004 = vunpack.c.l.b16 %v208
  %v1005 = vunpack.c.h.b16 %v208
  %v1006 = vunpack.c.l.b16 %v209
  %v1007 = vunpack.c.h.b16 %v209
  %v1008 = vunpack.c.l.b16 %v210
  %v1009 = vunpack.c.h.b16 %v210
  %v1010 = vunpack.c.l.b16 %v211
  %v1011 = vunpack.c.h.b16 %v211
  %v1012 = vunpack.c.l.b16 %v212
  %v1013 = vunpack.c.h.b16 %v212
  %v1014 = vunpack.c.l.b16 %v213
  %v1015 = vunpack.c.h.b16 %v213
  %v1016 = vunpack.c.l.b16 %v214
  %v1017 = vunpack.c.h.b16 %v214
  %v1018 = vunpack.c.l.b16 %v215
  %v1019 = vunpack.c.h.b16 %v215
  %v1020 = vunpack.c.l.b16 %v216
  %v1021 = vunpack.c.h.b16 %v216
  %v1022 = vunpack.c.l.b16 %v217
  %v1023 = vunpack.c.h.b16 %v217
  %v1024 = vunpack.c.l.b16 %v218
  %v1025 = vunpack.c.h.b16 %v218
  %v1026 = vunpack.c.l.b16 %v219
  %v1027 = vunpack.c.h.b16 %v219
  %v1028 = vunpack.c.l.b16 %v220
  %v1029 = vunpack.c.h.b16 %v220
  %v1030 = vunpack.c.l.b16 %v221
  %v1031 = vunpack.c.h.b16 %v221
  %v1032 = vunpack.c.l.b16 %v222
  %v1033 = vunpack.c.h.b16 %v222
  %v1034 = vunpack.c.l.b16 %v223
  %v1035 = vunpack.c.h.b16 %v223
  %v1036 = vunpack.c.l.b16 %v224
  %v1037 = vunpack.c.h.b16 %v224
  %v1038 = vunpack.c.l.b16 %v225
  %v1039 = vunpack.c.h.b16 %v225
  %v1040 = vunpack.c.l.b16 %v226
  %v1041 = vunpack.c.h.b16 %v226
  %v1042 = vunpack.c.l.b16 %v227
  %v1043 = vunpack.c.h.b16 %v227
  %v1044 = vunpack.c.l.b16 %v228
  %v1045 = vunpack.c.h.b16 %v228
  %v1046 = vunpack.c.l.b16 %v229
  %v1047 = vunpack.c.h.b16 %v229
  %v1048 = vunpack.c.l.b16 %v230
  %v1049 = vunpack.c.h.b16 %v230
  %v1050 = vunpack.c.l.b16 %v231
  %v1051 = vunpack.c.h.b16 %v231
  %v1052 = vunpack.c.l.b16 %v232
  %v1053 = vunpack.c.h.b16 %v232
  %v1054 = vunpack.c.l.b16 %v233
  %v1055 = vunpack.c.h.b16 %v233
  %v1056 = vunpack.c.l.b16 %v234
  %v1057 = vunpack.c.h.b16 %v234
  %v1058 = vunpack.c.l.b16 %v235
  %v1059 = vunpack.c.h.b16 %v235
  %v1060 = vunpack.c.l.b16 %v236
  %v1061 = vunpack.c.h.b16 %v236
  %v1062 = vunpack.c.l.b16 %v237
  %v1063 = vunpack.c.h.b16 %v237
  %v1064 = vunpack.c.l.b16 %v238
  %v1065 = vunpack.c.h.b16 %v238
  %v1066 = vunpack.c.l.b16 %v239
  %v1067 = vunpack.c.h.b16 %v239
  %v1068 = vunpack.c.l.b16 %v240
  %v1069 = vunpack.c.h.b16 %v240
  %v1070 = vunpack.c.l.b16 %v241
  %v1071 = vunpack.c.h.b16 %v241
  %v1072 = vunpack.c.l.b16 %v242
  %v1073 = vunpack.c.h.b16 %v242
  %v1074 = vunpack.c.l.b16 %v243
  %v1075 = vunpack.c.h.b16 %v243
  %v1076 = vunpack.c.l.b16 %v244
  %v1077 = vunpack.c.h.b16 %v244
  %v1078 = vunpack.c.l.b16 %v245
  %v1079 = vunpack.c.h.b16 %v245
  %v1080 = vunpack.c.l.b16 %v246
  %v1081 = vunpack.c.h.b16 %v246
  %v1082 = vunpack.c.l.b16 %v247
  %v1083 = vunpack.c.h.b16 %v247
  %v1084 = vunpack.c.l.b16 %v248
  %v1085 = vunpack.c.h.b16 %v248
  %v1086 = vunpack.c.l.b16 %v249
  %v1087 = vunpack.c.h.b16 %v249
  %v1088 = vunpack.c.l.b16 %v250
  %v1089 = vunpack.c.h.b16 %v250
  %v1090 = vunpack.c.l.b16 %v251
  %v1091 = vunpack.c.h.b16 %v251
  %v1092 = vunpack.c.l.b16 %v252
  %v1093 = vunpack.c.h.b16 %v252
  %v1094 = vunpack.c.l.b16 %v253
  %v1095 = vunpack.c.h.b16 %v253
  %v1096 = vunpack.c.l.b16 %v254
  %v1097 = vunpack.c.h.b16 %v254
  %v1098 = vunpack.c.l.b16 %v255
  %v1099 = vunpack.c.h.b16 %v255
  %v1100 = vunpack.c.l.b16 %v256
  %v1101 = vunpack.c.h.b16 %v256
  %v1102 = vunpack.c.l.b16 %v257
  %v1103 = vunpack.c.h.b16 %v257
  %v1104 = vunpack.c.l.b16 %v258
  %v1105 = vunpack.c.h.b16 %v258
  %v1106 = vunpack.c.l.b16 %v259
  %v1107 = vunpack.c.h.b16 %v259
  %v1108 = vunpack.c.l.b16 %v260
  %v1109 = vunpack.c.h.b16 %v260
  %v1110 = vunpack.c.l.b16 %v261
  %v1111 = vunpack.c.h.b16 %v261
  %v1112 = vunpack.c.l.b16 %v262
  %v1113 = vunpack.c.h.b16 %v262
  %v1114 = vunpack.c.l.b16 %v263
  %v1115 = vunpack.c.h.b16 %v263
  %v1116 = vunpack.c.l.b16 %v264
  %v1117 = vunpack.c.h.b16 %v264
  %v1118 = vunpack.c.l.b16 %v265
  %v1119 = vunpack.c.h.b16 %v265
  %v1120 = vunpack.c.l.b16 %v266
  %v1121 = vunpack.c.h.b16 %v266
  %v1122 = vunpack.c.l.b16 %v267
  %v1123 = vunpack.c.h.b16 %v267
  %v1124 = vunpack.c.l.b16 %v268
  %v1125 = vunpack.c.h.b16 %v268
  %v1126 = vunpack.c.l.b16 %v269
  %v1127 = vunpack.c.h.b16 %v269
  %v1128 = vunpack.c.l.b16 %v270
  %v1129 = vunpack.c.h.b16 %v270
  %v1130 = vunpack.c.l.b16 %v271
  %v1131 = vunpack.c.h.b16 %v271
  %v1132 = vunpack.c.l.b16 %v272
  %v1133 = vunpack.c.h.b16 %v272
  %v1134 = vunpack.c.l.b16 %v273
  %v1135 = vunpack.c.h.b16 %v273
  %v1136 = vunpack.c.l.b16 %v274
  %v1137 = vunpack.c.h.b16 %v274
  %v1138 = vunpack.c.l.b16 %v275
  %v1139 = vunpack.c.h.b16 %v275
  %v1140 = vunpack.c.l.b16 %v276
  %v1141 = vunpack.c.h.b16 %v276
  %v1142 = vunpack.c.l.b16 %v277
  %v1143 = vunpack.c.h.b16 %v277
  %v1144 = vunpack.c.l.b16 %v278
  %v1145 = vunpack.c.h.b16 %v278
  %v1146 = vunpack.c.l.b16 %v279
  %v1147 = vunpack.c.h.b16 %v279
  %v1148 = vunpack.c.l.b16 %v280
  %v1149 = vunpack.c.h.b16 %v280
  %v1150 = vunpack.c.l.b16 %v281
  %v1151 = vunpack.c.h.b16 %v281
  %v1152 = vunpack.c.l.b16 %v282
  %v1153 = vunpack.c.h.b16 %v282
  %v1154 = vunpack.c.l.b16 %v283
  %v1155 = vunpack.c.h.b16 %v283
  %v1156 = vunpack.c.l.b16 %v284
  %v1157 = vunpack.c.h.b16 %v284
  %v1158 = vunpack.c.l.b16 %v285
  %v1159 = vunpack.c.h.b16 %v285
  %v1160 = vunpack.c.l.b16 %v286
  %v1161 = vunpack.c.h.b16 %v286
  %v1162 = vunpack.c.l.b16 %v287
  %v1163 = vunpack.c.h.b16 %v287
  %v1164 = vunpack.c.l.b16 %v288
  %v1165 = vunpack.c.h.b16 %v288
  %v1166 = vunpack.c.l.b16 %v289
  %v1167 = vunpack.c.h.b16 %v289
  %v1168 = vunpack.c.l.b16 %v290
  %v1169 = vunpack.c.h.b16 %v290
  %v1170 = vunpack.c.l.b16 %v291
  %v1171 = vunpack.c.h.b16 %v291
  %v1172 = vunpack.c.l.b16 %v292
  %v1173 = vunpack.c.h.b16 %v292
  %v1174 = vunpack.c.l.b16 %v293
  %v1175 = vunpack.c.h.b16 %v293
  %v1176 = vunpack.c.l.b16 %v294
  %v1177 = vunpack.c.h.b16 %v294
  %v1178 = vunpack.c.l.b16 %v295
  %v1179 = vunpack.c.h.b16 %v295
  %v1180 = vunpack.c.l.b16 %v296
  %v1181 = vunpack.c.h.b16 %v296
  %v1182 = vunpack.c.l.b16 %v297
  %v1183 = vunpack.c.h.b16 %v297
  %v1184 = vunpack.c.l.b16 %v298
  %v1185 = vunpack.c.h.b16 %v298
  %v1186 = vunpack.c.l.b16 %v299
  %v1187 = vunpack.c.h.b16 %v299
  %v1188 = vunpack.c.l.b16 %v300
  %v1189 = vunpack.c.h.b16 %v300
  %v1190 = vunpack.c.l.b16 %v301
  %v1191 = vunpack.c.h.b16 %v301
  %v1192 = vunpack.c.l.b16 %v302
  %v1193 = vunpack.c.h.b16 %v302
  %v1194 = vunpack.c.l.b16 %v303
  %v1195 = vunpack.c.h.b16 %v303
  %v1196 = vunpack.c.l.b16 %v304
  %v1197 = vunpack.c.h.b16 %v304
  %v1198 = vunpack.c.l.b16 %v305
  %v1199 = vunpack.c.h.b16 %v305
  %v1200 = vunpack.c.l.b16 %v306
  %v1201 = vunpack.c.h.b16 %v306
  %v1202 = vunpack.c.l.b16 %v307
  %v1203 = vunpack.c.h.b16 %v307
  %v1204 = vunpack.c.l.b16 %v308
  %v1205 = vunpack.c.h.b16 %v308
  %v1206 = vunpack.c.l.b16 %v309
  %v1207 = vunpack.c.h.b16 %v309
  %v1208 = vunpack.c.l.b16 %v310
  %v1209 = vunpack.c.h.b16 %v310
  %v1210 = vpack.c.b16 %v640, %v634
  %v1211 = vpack.c.b16 %v641, %v635
  %v1212 = vpack.c.b16 %v642, %v636
  %v1213 = vpack.c.b16 %v643, %v637
  %v1214 = vpack.c.b16 %v644, %v638
  %v1215 = vpack.c.b16 %v645, %v639
  %v1216 = vpack.c.b16 %v652, %v646
  %v1217 = vpack.c.b16 %v653, %v647
  %v1218 = vpack.c.b16 %v654, %v648
  %v1219 = vpack.c.b16 %v655, %v649
  %v1220 = vpack.c.b16 %v656, %v650
  %v1221 = vpack.c.b16 %v657, %v651
  %v1222 = vpack.c.b16 %v664, %v658
  %v1223 = vpack.c.b16 %v665, %v659
  %v1224 = vpack.c.b16 %v666, %v660
  %v1225 = vpack.c.b16 %v667, %v661
  %v1226 = vpack.c.b16 %v668, %v662
  %v1227 = vpack.c.b16 %v669, %v663
  %v1228 = vpack.c.b16 %v676, %v670
  %v1229 = vpack.c.b16 %v677, %v671
  %v1230 = vpack.c.b16 %v678, %v672
  %v1231 = vpack.c.b16 %v679, %v673
  %v1232 = vpack.c.b16 %v680, %v674
  %v1233 = vpack.c.b16 %v681, %v675
  %v1234 = vpack.c.b16 %v688, %v682
  %v1235 = vpack.c.b16 %v689, %v683
  %v1236 = vpack.c.b16 %v690, %v684
  %v1237 = vpack.c.b16 %v691, %v685
  %v1238 = vpack.c.b16 %v692, %v686
  %v1239 = vpack.c.b16 %v693, %v687
  %v1240 = vpack.c.b16 %v700, %v694
  %v1241 = vpack.c.b16 %v701, %v695
  %v1242 = vpack.c.b16 %v702, %v696
  %v1243 = vpack.c.b16 %v703, %v697
  %v1244 = vpack.c.b16 %v704, %v698
  %v1245 = vpack.c.b16 %v705, %v699
  %v1246 = vpack.c.b16 %v712, %v706
  %v1247 = vpack.c.b16 %v713, %v707
  %v1248 = vpack.c.b16 %v714, %v708
  %v1249 = vpack.c.b16 %v715, %v709
  %v1250 = vpack.c.b16 %v716, %v710
  %v1251 = vpack.c.b16 %v717, %v711
  %v1252 = vpack.c.b16 %v724, %v718
  %v1253 = vpack.c.b16 %v725, %v719
  %v1254 = vpack.c.b16 %v726, %v720
  %v1255 = vpack.c.b16 %v727, %v721
  %v1256 = vpack.c.b16 %v728, %v722
  %v1257 = vpack.c.b16 %v729, %v723
  %v1258 = vpack.c.b16 %v736, %v730
  %v1259 = vpack.c.b16 %v737, %v731
  %v1260 = vpack.c.b16 %v738, %v732
  %v1261 = vpack.c.b16 %v739, %v733
  %v1262 = vpack.c.b16 %v740, %v734
  %v1263 = vpack.c.b16 %v741, %v735
  %v1264 = vpack.c.b16 %v748, %v742
  %v1265 = vpack.c.b16 %v749, %v743
  %v1266 = vpack.c.b16 %v750, %v744
  %v1267 = vpack.c.b16 %v751, %v745
  %v1268 = vpack.c.b16 %v752, %v746
  %v1269 = vpack.c.b16 %v753, %v747
  %v1270 = vpack.c.b16 %v760, %v754
  %v1271 = vpack.c.b16 %v761, %v755
  %v1272 = vpack.c.b16 %v762, %v756
  %v1273 = vpack.c.b16 %v763, %v757
  %v1274 = vpack.c.b16 %v764, %v758
  %v1275 = vpack.c.b16 %v765, %v759
  %v1276 = vpack.c.b16 %v772, %v766
  %v1277 = vpack.c.b16 %v773, %v767
  %v1278 = vpack.c.b16 %v774, %v768
  %v1279 = vpack.c.b16 %v775, %v769
  %v1280 = vpack.c.b16 %v776, %v770
  %v1281 = vpack.c.b16 %v777, %v771
  %v1282 = vpack.c.b16 %v784, %v778
  %v1283 = vpack.c.b16 %v785, %v779
  %v1284 = vpack.c.b16 %v786, %v780
  %v1285 = vpack.c.b16 %v787, %v781
  %v1286 = vpack.c.b16 %v788, %v782
  %v1287 = vpack.c.b16 %v789, %v783
  %v1288 = vpack.c.b16 %v796, %v790
  %v1289 = vpack.c.b16 %v797, %v791
  %v1290 = vpack.c.b16 %v798, %v792
  %v1291 = vpack.c.b16 %v799, %v793
  %v1292 = vpack.c.b16 %v800, %v794
  %v1293 = vpack.c.b16 %v801, %v795
  %v1294 = vpack.c.b16 %v808, %v802
  %v1295 = vpack.c.b16 %v809, %v803
  %v1296 = vpack.c.b16 %v810, %v804
  %v1297 = vpack.c.b16 %v811, %v805
  %v1298 = vpack.c.b16 %v812, %v806
  %v1299 = vpack.c.b16 %v813, %v807
  %v1300 = vpack.c.b16 %v820, %v814
  %v1301 = vpack.c.b16 %v821, %v815
  %v1302 = vpack.c.b16 %v822, %v816
  %v1303 = vpack.c.b16 %v823, %v817
  %v1304 = vpack.c.b16 %v824, %v818
  %v1305 = vpack.c.b16 %v825, %v819
  %v1306 = vpack.c.b16 %v832, %v826
  %v1307 = vpack.c.b16 %v833, %v827
  %v1308 = vpack.c.b16 %v834, %v828
  %v1309 = vpack.c.b16 %v835, %v829
  %v1310 = vpack.c.b16 %v836, %v830
  %v1311 = vpack.c.b16 %v837, %v831
  %v1312 = vpack.c.b16 %v844, %v838
  %v1313 = vpack.c.b16 %v845, %v839
  %v1314 = vpack.c.b16 %v846, %v840
  %v1315 = vpack.c.b16 %v847, %v841
  %v1316 = vpack.c.b16 %v848, %v842
  %v1317 = vpack.c.b16 %v849, %v843
  %v1318 = vpack.c.b16 %v856, %v850
  %v1319 = vpack.c.b16 %v857, %v851
  %v1320 = vpack.c.b16 %v858, %v852
  %v1321 = vpack.c.b16 %v859, %v853
  %v1322 = vpack.c.b16 %v860, %v854
  %v1323 = vpack.c.b16 %v861, %v855
  %v1324 = vpack.c.b16 %v868, %v862
  %v1325 = vpack.c.b16 %v869, %v863
  %v1326 = vpack.c.b16 %v870, %v864
  %v1327 = vpack.c.b16 %v871, %v865
  %v1328 = vpack.c.b16 %v872, %v866
  %v1329 = vpack.c.b16 %v873, %v867
  %v1330 = vpack.c.b16 %v880, %v874
  %v1331 = vpack.c.b16 %v881, %v875
  %v1332 = vpack.c.b16 %v882, %v876
  %v1333 = vpack.c.b16 %v883, %v877
  %v1334 = vpack.c.b16 %v884, %v878
  %v1335 = vpack.c.b16 %v885, %v879
  %v1336 = vpack.c.b16 %v892, %v886
  %v1337 = vpack.c.b16 %v893, %v887
  %v1338 = vpack.c.b16 %v894, %v888
  %v1339 = vpack.c.b16 %v895, %v889
  %v1340 = vpack.c.b16 %v896, %v890
  %v1341 = vpack.c.b16 %v897, %v891
  %v1342 = vpack.c.b16 %v904, %v898
  %v1343 = vpack.c.b16 %v905, %v899
  %v1344 = vpack.c.b16 %v906, %v900
  %v1345 = vpack.c.b16 %v907, %v901
  %v1346 = vpack.c.b16 %v908, %v902
  %v1347 = vpack.c.b16 %v909, %v903
  %v1348 = vpack.c.b16 %v916, %v910
  %v1349 = vpack.c.b16 %v917, %v911
  %v1350 = vpack.c.b16 %v918, %v912
  %v1351 = vpack.c.b16 %v919, %v913
  %v1352 = vpack.c.b16 %v920, %v914
  %v1353 = vpack.c.b16 %v921, %v915
  %v1354 = vpack.c.b16 %v928, %v922
  %v1355 = vpack.c.b16 %v929, %v923
  %v1356 = vpack.c.b16 %v930, %v924
  %v1357 = vpack.c.b16 %v931, %v925
  %v1358 = vpack.c.b16 %v932, %v926
  %v1359 = vpack.c.b16 %v933, %v927
  %v1360 = vpack.c.b16 %v940, %v934
  %v1361 = vpack.c.b16 %v941, %v935
  %v1362 = vpack.c.b16 %v942, %v936
  %v1363 = vpack.c.b16 %v943, %v937
  %v1364 = vpack.c.b16 %v944, %v938
  %v1365 = vpack.c.b16 %v945, %v939
  %v1366 = vpack.c.b16 %v952, %v946
  %v1367 = vpack.c.b16 %v953, %v947
  %v1368 = vpack.c.b16 %v954, %v948
  %v1369 = vpack.c.b16 %v955, %v949
  %v1370 = vpack.c.b16 %v956, %v950
  %v1371 = vpack.c.b16 %v957, %v951
  %v1372 = vpack.c.b16 %v964, %v958
  %v1373 = vpack.c.b16 %v965, %v959
  %v1374 = vpack.c.b16 %v966, %v960
  %v1375 = vpack.c.b16 %v967, %v961
  %v1376 = vpack.c.b16 %v968, %v962
  %v1377 = vpack.c.b16 %v969, %v963
  %v1378 = vpack.c.b16 %v976, %v970
  %v1379 = vpack.c.b16 %v977, %v971
  %v1380 = vpack.c.b16 %v978, %v972
  %v1381 = vpack.c.b16 %v979, %v973
  %v1382 = vpack.c.b16 %v980, %v974
  %v1383 = vpack.c.b16 %v981, %v975
  %v1384 = vpack.c.b16 %v988, %v982
  %v1385 = vpack.c.b16 %v989, %v983
  %v1386 = vpack.c.b16 %v990, %v984
  %v1387 = vpack.c.b16 %v991, %v985
  %v1388 = vpack.c.b16 %v992, %v986
  %v1389 = vpack.c.b16 %v993, %v987
  %v1390 = vpack.c.b16 %v1000, %v994
  %v1391 = vpack.c.b16 %v1001, %v995
  %v1392 = vpack.c.b16 %v1002, %v996
  %v1393 = vpack.c.b16 %v1003, %v997
  %v1394 = vpack.c.b16 %v1004, %v998
  %v1395 = vpack.c.b16 %v1005, %v999
  %v1396 = vpack.c.b16 %v1012, %v1006
  %v1397 = vpack.c.b16 %v1013, %v1007
  %v1398 = vpack.c.b16 %v1014, %v1008
  %v1399 = vpack.c.b16 %v1015, %v1009
  %v1400 = vpack.c.b16 %v1016, %v1010
  %v1401 = vpack.c.b16 %v1017, %v1011
  %v1402 = vpack.c.b16 %v1024, %v1018
  %v1403 = vpack.c.b16 %v1025, %v1019
  %v1404 = vpack.c.b16 %v1026, %v1020
  %v1405 = vpack.c.b16 %v1027, %v1021
  %v1406 = vpack.c.b16 %v1028, %v1022
  %v1407 = vpack.c.b16 %v1029, %v1023
  %v1408 = vpack.c.b16 %v1036, %v1030
  %v1409 = vpack.c.b16 %v1037, %v1031
  %v1410 = vpack.c.b16 %v1038, %v1032
  %v1411 = vpack.c.b16 %v1039, %v1033
  %v1412 = vpack.c.b16 %v1040, %v1034
  %v1413 = vpack.c.b16 %v1041, %v1035
  %v1414 = vpack.c.b16 %v1048, %v1042
  %v1415 = vpack.c.b16 %v1049, %v1043
  %v1416 = vpack.c.b16 %v1050, %v1044
  %v1417 = vpack.c.b16 %v1051, %v1045
  %v1418 = vpack.c.b16 %v1052, %v1046
  %v1419 = vpack.c.b16 %v1053, %v1047
  %v1420 = vpack.c.b16 %v1060, %v1054
  %v1421 = vpack.c.b16 %v1061, %v1055
  %v1422 = vpack.c.b16 %v1062, %v1056
  %v1423 = vpack.c.b16 %v1063, %v1057
  %v1424 = vpack.c.b16 %v1064, %v1058
  %v1425 = vpack.c.b16 %v1065, %v1059
  %v1426 = vpack.c.b16 %v1072, %v1066
  %v1427 = vpack.c.b16 %v1073, %v1067
  %v1428 = vpack.c.b16 %v1074, %v1068
  %v1429 = vpack.c.b16 %v1075, %v1069
  %v1430 = vpack.c.b16 %v1076, %v1070
  %v1431 = vpack.c.b16 %v1077, %v1071
  %v1432 = vpack.c.b16 %v1084, %v1078
  %v1433 = vpack.c.b16 %v1085, %v1079
  %v1434 = vpack.c.b16 %v1086, %v1080
  %v1435 = vpack.c.b16 %v1087, %v1081
  %v1436 = vpack.c.b16 %v1088, %v1082
  %v1437 = vpack.c.b16 %v1089, %v1083
  %v1438 = vpack.c.b16 %v1096, %v1090
  %v1439 = vpack.c.b16 %v1097, %v1091
  %v1440 = vpack.c.b16 %v1098, %v1092
  %v1441 = vpack.c.b16 %v1099, %v1093
  %v1442 = vpack.c.b16 %v1100, %v1094
  %v1443 = vpack.c.b16 %v1101, %v1095
  %v1444 = vpack.c.b16 %v1108, %v1102
  %v1445 = vpack.c.b16 %v1109, %v1103
  %v1446 = vpack.c.b16 %v1110, %v1104
  %v1447 = vpack.c.b16 %v1111, %v1105
  %v1448 = vpack.c.b16 %v1112, %v1106
  %v1449 = vpack.c.b16 %v1113, %v1107
  %v1450 = vpack.c.b16 %v1120, %v1114
  %v1451 = vpack.c.b16 %v1121, %v1115
  %v1452 = vpack.c.b16 %v1122, %v1116
  %v1453 = vpack.c.b16 %v1123, %v1117
  %v1454 = vpack.c.b16 %v1124, %v1118
  %v1455 = vpack.c.b16 %v1125, %v1119
  %v1456 = vpack.c.b16 %v1132, %v1126
  %v1457 = vpack.c.b16 %v1133, %v1127
  %v1458 = vpack.c.b16 %v1134, %v1128
  %v1459 = vpack.c.b16 %v1135, %v1129
  %v1460 = vpack.c.b16 %v1136, %v1130
  %v1461 = vpack.c.b16 %v1137, %v1131
  %v1462 = vpack.c.b16 %v1144, %v1138
  %v1463 = vpack.c.b16 %v1145, %v1139
  %v1464 = vpack.c.b16 %v1146, %v1140
  %v1465 = vpack.c.b16 %v1147, %v1141
  %v1466 = vpack.c.b16 %v1148, %v1142
  %v1467 = vpack.c.b16 %v1149, %v1143
  %v1468 = vpack.c.b16 %v1156, %v1150
  %v1469 = vpack.c.b16 %v1157, %v1151
  %v1470 = vpack.c.b16 %v1158, %v1152
  %v1471 = vpack.c.b16 %v1159, %v1153
  %v1472 = vpack.c.b16 %v1160, %v1154
  %v1473 = vpack.c.b16 %v1161, %v1155
  %v1474 = vpack.c.b16 %v1168, %v1162
  %v1475 = vpack.c.b16 %v1169, %v1163
  %v1476 = vpack.c.b16 %v1170, %v1164
  %v1477 = vpack.c.b16 %v1171, %v1165
  %v1478 = vpack.c.b16 %v1172, %v1166
  %v1479 = vpack.c.b16 %v1173, %v1167
  %v1480 = vpack.c.b16 %v1180, %v1174
  %v1481 = vpack.c.b16 %v1181, %v1175
  %v1482 = vpack.c.b16 %v1182, %v1176
  %v1483 = vpack.c.b16 %v1183, %v1177
  %v1484 = vpack.c.b16 %v1184, %v1178
  %v1485 = vpack.c.b16 %v1185, %v1179
  %v1486 = vpack.c.b16 %v1192, %v1186
  %v1487 = vpack.c.b16 %v1193, %v1187
  %v1488 = vpack.c.b16 %v1194, %v1188
  %v1489 = vpack.c.b16 %v1195, %v1189
  %v1490 = vpack.c.b16 %v1196, %v1190
  %v1491 = vpack.c.b16 %v1197, %v1191
  %v1492 = vpack.c.b16 %v1204, %v1198
  %v1493 = vpack.c.b16 %v1205, %v1199
  %v1494 = vpack.c.b16 %v1206, %v1200
  %v1495 = vpack.c.b16 %v1207, %v1201
  %v1496 = vpack.c.b16 %v1208, %v1202
  %v1497 = vpack.c.b16 %v1209, %v1203
  %1786 = vmatpush.bf16.msra.mxu0 %v1252
  %1787 = vmatpush.bf16.msra.mxu0 %v1246
  %1788 = vmatpush.bf16.msra.mxu0 %v1240
  %1789 = vmatpush.bf16.msra.mxu0 %v1234
  %1790 = vmatpush.bf16.msra.mxu0 %v1228
  %1791 = vmatpush.bf16.msra.mxu0 %v1222
  %1792 = vmatpush.bf16.msra.mxu0 %v1216
  %1793 = vmatpush.bf16.msra.mxu0 %v1210
  %1794 = vmatmul.bf16.gmra.mxu0 %v334
  %v1795 = vpop.f32.mrf.mxu0
  %v1796 = vadd.f32 %v313, %v1795
  %v1797 = vpop.f32.mrf.mxu0
  %1798 = vdwg.mxu0
  %1799 = vmatpush.bf16.msra.mxu0 %v1300
  %1800 = vmatpush.bf16.msra.mxu0 %v1294
  %1801 = vmatpush.bf16.msra.mxu0 %v1288
  %1802 = vmatpush.bf16.msra.mxu0 %v1282
  %1803 = vmatpush.bf16.msra.mxu0 %v1276
  %1804 = vmatpush.bf16.msra.mxu0 %v1270
  %1805 = vmatpush.bf16.msra.mxu0 %v1264
  %1806 = vmatpush.bf16.msra.mxu0 %v1258
  %1807 = vmatmul.bf16.gmra.mxu0 %v335
  %v1808 = vpop.f32.mrf.mxu0
  %v1809 = vadd.f32 %v1796, %v1808
  %v1810 = vpop.f32.mrf.mxu0
  %1811 = vdwg.mxu0
  %1812 = vmatpush.bf16.msra.mxu0 %v1348
  %1813 = vmatpush.bf16.msra.mxu0 %v1342
  %1814 = vmatpush.bf16.msra.mxu0 %v1336
  %1815 = vmatpush.bf16.msra.mxu0 %v1330
  %1816 = vmatpush.bf16.msra.mxu0 %v1324
  %1817 = vmatpush.bf16.msra.mxu0 %v1318
  %1818 = vmatpush.bf16.msra.mxu0 %v1312
  %1819 = vmatpush.bf16.msra.mxu0 %v1306
  %1820 = vmatmul.bf16.gmra.mxu0 %v336
  %v1821 = vpop.f32.mrf.mxu0
  %v1822 = vadd.f32 %v1809, %v1821
  %v1823 = vpop.f32.mrf.mxu0
  %1824 = vdwg.mxu0
  %1825 = vmatpush.bf16.msra.mxu0 %v1396
  %1826 = vmatpush.bf16.msra.mxu0 %v1390
  %1827 = vmatpush.bf16.msra.mxu0 %v1384
  %1828 = vmatpush.bf16.msra.mxu0 %v1378
  %1829 = vmatpush.bf16.msra.mxu0 %v1372
  %1830 = vmatpush.bf16.msra.mxu0 %v1366
  %1831 = vmatpush.bf16.msra.mxu0 %v1360
  %1832 = vmatpush.bf16.msra.mxu0 %v1354
  %1833 = vmatmul.bf16.gmra.mxu0 %v337
  %v1834 = vpop.f32.mrf.mxu0
  %v1835 = vadd.f32 %v1822, %v1834
  %v1836 = vpop.f32.mrf.mxu0
  %1837 = vdwg.mxu0
  %1838 = vmatpush.bf16.msra.mxu0 %v1444
  %1839 = vmatpush.bf16.msra.mxu0 %v1438
  %1840 = vmatpush.bf16.msra.mxu0 %v1432
  %1841 = vmatpush.bf16.msra.mxu0 %v1426
  %1842 = vmatpush.bf16.msra.mxu0 %v1420
  %1843 = vmatpush.bf16.msra.mxu0 %v1414
  %1844 = vmatpush.bf16.msra.mxu0 %v1408
  %1845 = vmatpush.bf16.msra.mxu0 %v1402
  %1846 = vmatmul.bf16.gmra.mxu0 %v338
  %v1847 = vpop.f32.mrf.mxu0
  %v1848 = vadd.f32 %v1835, %v1847
  %v1849 = vpop.f32.mrf.mxu0
  %1850 = vdwg.mxu0
  %1851 = vmatpush.bf16.msra.mxu0 %v1492
  %1852 = vmatpush.bf16.msra.mxu0 %v1486
  %1853 = vmatpush.bf16.msra.mxu0 %v1480
  %1854 = vmatpush.bf16.msra.mxu0 %v1474
  %1855 = vmatpush.bf16.msra.mxu0 %v1468
  %1856 = vmatpush.bf16.msra.mxu0 %v1462
  %1857 = vmatpush.bf16.msra.mxu0 %v1456
  %1858 = vmatpush.bf16.msra.mxu0 %v1450
  %1859 = vmatmul.bf16.gmra.mxu0 %v339
  %v1860 = vpop.f32.mrf.mxu0
  %v1861 = vadd.f32 %v1848, %v1860
  %v1862 = vpop.f32.mrf.mxu0
  %1863 = vdwg.mxu0
  %1864 = vmatpush.bf16.msra.mxu0 %v1253
  %1865 = vmatpush.bf16.msra.mxu0 %v1247
  %1866 = vmatpush.bf16.msra.mxu0 %v1241
  %1867 = vmatpush.bf16.msra.mxu0 %v1235
  %1868 = vmatpush.bf16.msra.mxu0 %v1229
  %1869 = vmatpush.bf16.msra.mxu0 %v1223
  %1870 = vmatpush.bf16.msra.mxu0 %v1217
  %1871 = vmatpush.bf16.msra.mxu0 %v1211
  %1872 = vmatmul.bf16.gmra.mxu0 %v334
  %v1873 = vpop.f32.mrf.mxu0
  %v1874 = vadd.f32 %v314, %v1873
  %v1875 = vpop.f32.mrf.mxu0
  %1876 = vdwg.mxu0
  %1877 = vmatpush.bf16.msra.mxu0 %v1301
  %1878 = vmatpush.bf16.msra.mxu0 %v1295
  %1879 = vmatpush.bf16.msra.mxu0 %v1289
  %1880 = vmatpush.bf16.msra.mxu0 %v1283
  %1881 = vmatpush.bf16.msra.mxu0 %v1277
  %1882 = vmatpush.bf16.msra.mxu0 %v1271
  %1883 = vmatpush.bf16.msra.mxu0 %v1265
  %1884 = vmatpush.bf16.msra.mxu0 %v1259
  %1885 = vmatmul.bf16.gmra.mxu0 %v335
  %v1886 = vpop.f32.mrf.mxu0
  %v1887 = vadd.f32 %v1874, %v1886
  %v1888 = vpop.f32.mrf.mxu0
  %1889 = vdwg.mxu0
  %1890 = vmatpush.bf16.msra.mxu0 %v1349
  %1891 = vmatpush.bf16.msra.mxu0 %v1343
  %1892 = vmatpush.bf16.msra.mxu0 %v1337
  %1893 = vmatpush.bf16.msra.mxu0 %v1331
  %1894 = vmatpush.bf16.msra.mxu0 %v1325
  %1895 = vmatpush.bf16.msra.mxu0 %v1319
  %1896 = vmatpush.bf16.msra.mxu0 %v1313
  %1897 = vmatpush.bf16.msra.mxu0 %v1307
  %1898 = vmatmul.bf16.gmra.mxu0 %v336
  %v1899 = vpop.f32.mrf.mxu0
  %v1900 = vadd.f32 %v1887, %v1899
  %v1901 = vpop.f32.mrf.mxu0
  %1902 = vdwg.mxu0
  %1903 = vmatpush.bf16.msra.mxu0 %v1397
  %1904 = vmatpush.bf16.msra.mxu0 %v1391
  %1905 = vmatpush.bf16.msra.mxu0 %v1385
  %1906 = vmatpush.bf16.msra.mxu0 %v1379
  %1907 = vmatpush.bf16.msra.mxu0 %v1373
  %1908 = vmatpush.bf16.msra.mxu0 %v1367
  %1909 = vmatpush.bf16.msra.mxu0 %v1361
  %1910 = vmatpush.bf16.msra.mxu0 %v1355
  %1911 = vmatmul.bf16.gmra.mxu0 %v337
  %v1912 = vpop.f32.mrf.mxu0
  %v1913 = vadd.f32 %v1900, %v1912
  %v1914 = vpop.f32.mrf.mxu0
  %1915 = vdwg.mxu0
  %1916 = vmatpush.bf16.msra.mxu0 %v1445
  %1917 = vmatpush.bf16.msra.mxu0 %v1439
  %1918 = vmatpush.bf16.msra.mxu0 %v1433
  %1919 = vmatpush.bf16.msra.mxu0 %v1427
  %1920 = vmatpush.bf16.msra.mxu0 %v1421
  %1921 = vmatpush.bf16.msra.mxu0 %v1415
  %1922 = vmatpush.bf16.msra.mxu0 %v1409
  %1923 = vmatpush.bf16.msra.mxu0 %v1403
  %1924 = vmatmul.bf16.gmra.mxu0 %v338
  %v1925 = vpop.f32.mrf.mxu0
  %v1926 = vadd.f32 %v1913, %v1925
  %v1927 = vpop.f32.mrf.mxu0
  %1928 = vdwg.mxu0
  %1929 = vmatpush.bf16.msra.mxu0 %v1493
  %1930 = vmatpush.bf16.msra.mxu0 %v1487
  %1931 = vmatpush.bf16.msra.mxu0 %v1481
  %1932 = vmatpush.bf16.msra.mxu0 %v1475
  %1933 = vmatpush.bf16.msra.mxu0 %v1469
  %1934 = vmatpush.bf16.msra.mxu0 %v1463
  %1935 = vmatpush.bf16.msra.mxu0 %v1457
  %1936 = vmatpush.bf16.msra.mxu0 %v1451
  %1937 = vmatmul.bf16.gmra.mxu0 %v339
  %v1938 = vpop.f32.mrf.mxu0
  %v1939 = vadd.f32 %v1926, %v1938
  %v1940 = vpop.f32.mrf.mxu0
  %1941 = vdwg.mxu0
  %1942 = vmatpush.bf16.msra.mxu0 %v1254
  %1943 = vmatpush.bf16.msra.mxu0 %v1248
  %1944 = vmatpush.bf16.msra.mxu0 %v1242
  %1945 = vmatpush.bf16.msra.mxu0 %v1236
  %1946 = vmatpush.bf16.msra.mxu0 %v1230
  %1947 = vmatpush.bf16.msra.mxu0 %v1224
  %1948 = vmatpush.bf16.msra.mxu0 %v1218
  %1949 = vmatpush.bf16.msra.mxu0 %v1212
  %1950 = vmatmul.bf16.gmra.mxu0 %v334
  %v1951 = vpop.f32.mrf.mxu0
  %v1952 = vadd.f32 %v315, %v1951
  %v1953 = vpop.f32.mrf.mxu0
  %1954 = vdwg.mxu0
  %1955 = vmatpush.bf16.msra.mxu0 %v1302
  %1956 = vmatpush.bf16.msra.mxu0 %v1296
  %1957 = vmatpush.bf16.msra.mxu0 %v1290
  %1958 = vmatpush.bf16.msra.mxu0 %v1284
  %1959 = vmatpush.bf16.msra.mxu0 %v1278
  %1960 = vmatpush.bf16.msra.mxu0 %v1272
  %1961 = vmatpush.bf16.msra.mxu0 %v1266
  %1962 = vmatpush.bf16.msra.mxu0 %v1260
  %1963 = vmatmul.bf16.gmra.mxu0 %v335
  %v1964 = vpop.f32.mrf.mxu0
  %v1965 = vadd.f32 %v1952, %v1964
  %v1966 = vpop.f32.mrf.mxu0
  %1967 = vdwg.mxu0
  %1968 = vmatpush.bf16.msra.mxu0 %v1350
  %1969 = vmatpush.bf16.msra.mxu0 %v1344
  %1970 = vmatpush.bf16.msra.mxu0 %v1338
  %1971 = vmatpush.bf16.msra.mxu0 %v1332
  %1972 = vmatpush.bf16.msra.mxu0 %v1326
  %1973 = vmatpush.bf16.msra.mxu0 %v1320
  %1974 = vmatpush.bf16.msra.mxu0 %v1314
  %1975 = vmatpush.bf16.msra.mxu0 %v1308
  %1976 = vmatmul.bf16.gmra.mxu0 %v336
  %v1977 = vpop.f32.mrf.mxu0
  %v1978 = vadd.f32 %v1965, %v1977
  %v1979 = vpop.f32.mrf.mxu0
  %1980 = vdwg.mxu0
  %1981 = vmatpush.bf16.msra.mxu0 %v1398
  %1982 = vmatpush.bf16.msra.mxu0 %v1392
  %1983 = vmatpush.bf16.msra.mxu0 %v1386
  %1984 = vmatpush.bf16.msra.mxu0 %v1380
  %1985 = vmatpush.bf16.msra.mxu0 %v1374
  %1986 = vmatpush.bf16.msra.mxu0 %v1368
  %1987 = vmatpush.bf16.msra.mxu0 %v1362
  %1988 = vmatpush.bf16.msra.mxu0 %v1356
  %1989 = vmatmul.bf16.gmra.mxu0 %v337
  %v1990 = vpop.f32.mrf.mxu0
  %v1991 = vadd.f32 %v1978, %v1990
  %v1992 = vpop.f32.mrf.mxu0
  %1993 = vdwg.mxu0
  %1994 = vmatpush.bf16.msra.mxu0 %v1446
  %1995 = vmatpush.bf16.msra.mxu0 %v1440
  %1996 = vmatpush.bf16.msra.mxu0 %v1434
  %1997 = vmatpush.bf16.msra.mxu0 %v1428
  %1998 = vmatpush.bf16.msra.mxu0 %v1422
  %1999 = vmatpush.bf16.msra.mxu0 %v1416
  %2000 = vmatpush.bf16.msra.mxu0 %v1410
  %2001 = vmatpush.bf16.msra.mxu0 %v1404
  %2002 = vmatmul.bf16.gmra.mxu0 %v338
  %v2003 = vpop.f32.mrf.mxu0
  %v2004 = vadd.f32 %v1991, %v2003
  %v2005 = vpop.f32.mrf.mxu0
  %2006 = vdwg.mxu0
  %2007 = vmatpush.bf16.msra.mxu0 %v1494
  %2008 = vmatpush.bf16.msra.mxu0 %v1488
  %2009 = vmatpush.bf16.msra.mxu0 %v1482
  %2010 = vmatpush.bf16.msra.mxu0 %v1476
  %2011 = vmatpush.bf16.msra.mxu0 %v1470
  %2012 = vmatpush.bf16.msra.mxu0 %v1464
  %2013 = vmatpush.bf16.msra.mxu0 %v1458
  %2014 = vmatpush.bf16.msra.mxu0 %v1452
  %2015 = vmatmul.bf16.gmra.mxu0 %v339
  %v2016 = vpop.f32.mrf.mxu0
  %v2017 = vadd.f32 %v2004, %v2016
  %v2018 = vpop.f32.mrf.mxu0
  %2019 = vdwg.mxu0
  %2020 = vmatpush.bf16.msra.mxu0 %v1255
  %2021 = vmatpush.bf16.msra.mxu0 %v1249
  %2022 = vmatpush.bf16.msra.mxu0 %v1243
  %2023 = vmatpush.bf16.msra.mxu0 %v1237
  %2024 = vmatpush.bf16.msra.mxu0 %v1231
  %2025 = vmatpush.bf16.msra.mxu0 %v1225
  %2026 = vmatpush.bf16.msra.mxu0 %v1219
  %2027 = vmatpush.bf16.msra.mxu0 %v1213
  %2028 = vmatmul.bf16.gmra.mxu0 %v334
  %v2029 = vpop.f32.mrf.mxu0
  %v2030 = vadd.f32 %v316, %v2029
  %v2031 = vpop.f32.mrf.mxu0
  %2032 = vdwg.mxu0
  %2033 = vmatpush.bf16.msra.mxu0 %v1303
  %2034 = vmatpush.bf16.msra.mxu0 %v1297
  %2035 = vmatpush.bf16.msra.mxu0 %v1291
  %2036 = vmatpush.bf16.msra.mxu0 %v1285
  %2037 = vmatpush.bf16.msra.mxu0 %v1279
  %2038 = vmatpush.bf16.msra.mxu0 %v1273
  %2039 = vmatpush.bf16.msra.mxu0 %v1267
  %2040 = vmatpush.bf16.msra.mxu0 %v1261
  %2041 = vmatmul.bf16.gmra.mxu0 %v335
  %v2042 = vpop.f32.mrf.mxu0
  %v2043 = vadd.f32 %v2030, %v2042
  %v2044 = vpop.f32.mrf.mxu0
  %2045 = vdwg.mxu0
  %2046 = vmatpush.bf16.msra.mxu0 %v1351
  %2047 = vmatpush.bf16.msra.mxu0 %v1345
  %2048 = vmatpush.bf16.msra.mxu0 %v1339
  %2049 = vmatpush.bf16.msra.mxu0 %v1333
  %2050 = vmatpush.bf16.msra.mxu0 %v1327
  %2051 = vmatpush.bf16.msra.mxu0 %v1321
  %2052 = vmatpush.bf16.msra.mxu0 %v1315
  %2053 = vmatpush.bf16.msra.mxu0 %v1309
  %2054 = vmatmul.bf16.gmra.mxu0 %v336
  %v2055 = vpop.f32.mrf.mxu0
  %v2056 = vadd.f32 %v2043, %v2055
  %v2057 = vpop.f32.mrf.mxu0
  %2058 = vdwg.mxu0
  %2059 = vmatpush.bf16.msra.mxu0 %v1399
  %2060 = vmatpush.bf16.msra.mxu0 %v1393
  %2061 = vmatpush.bf16.msra.mxu0 %v1387
  %2062 = vmatpush.bf16.msra.mxu0 %v1381
  %2063 = vmatpush.bf16.msra.mxu0 %v1375
  %2064 = vmatpush.bf16.msra.mxu0 %v1369
  %2065 = vmatpush.bf16.msra.mxu0 %v1363
  %2066 = vmatpush.bf16.msra.mxu0 %v1357
  %2067 = vmatmul.bf16.gmra.mxu0 %v337
  %v2068 = vpop.f32.mrf.mxu0
  %v2069 = vadd.f32 %v2056, %v2068
  %v2070 = vpop.f32.mrf.mxu0
  %2071 = vdwg.mxu0
  %2072 = vmatpush.bf16.msra.mxu0 %v1447
  %2073 = vmatpush.bf16.msra.mxu0 %v1441
  %2074 = vmatpush.bf16.msra.mxu0 %v1435
  %2075 = vmatpush.bf16.msra.mxu0 %v1429
  %2076 = vmatpush.bf16.msra.mxu0 %v1423
  %2077 = vmatpush.bf16.msra.mxu0 %v1417
  %2078 = vmatpush.bf16.msra.mxu0 %v1411
  %2079 = vmatpush.bf16.msra.mxu0 %v1405
  %2080 = vmatmul.bf16.gmra.mxu0 %v338
  %v2081 = vpop.f32.mrf.mxu0
  %v2082 = vadd.f32 %v2069, %v2081
  %v2083 = vpop.f32.mrf.mxu0
  %2084 = vdwg.mxu0
  %2085 = vmatpush.bf16.msra.mxu0 %v1495
  %2086 = vmatpush.bf16.msra.mxu0 %v1489
  %2087 = vmatpush.bf16.msra.mxu0 %v1483
  %2088 = vmatpush.bf16.msra.mxu0 %v1477
  %2089 = vmatpush.bf16.msra.mxu0 %v1471
  %2090 = vmatpush.bf16.msra.mxu0 %v1465
  %2091 = vmatpush.bf16.msra.mxu0 %v1459
  %2092 = vmatpush.bf16.msra.mxu0 %v1453
  %2093 = vmatmul.bf16.gmra.mxu0 %v339
  %v2094 = vpop.f32.mrf.mxu0
  %v2095 = vadd.f32 %v2082, %v2094
  %v2096 = vpop.f32.mrf.mxu0
  %2097 = vdwg.mxu0
  %2098 = vmatpush.bf16.msra.mxu0 %v1256
  %2099 = vmatpush.bf16.msra.mxu0 %v1250
  %2100 = vmatpush.bf16.msra.mxu0 %v1244
  %2101 = vmatpush.bf16.msra.mxu0 %v1238
  %2102 = vmatpush.bf16.msra.mxu0 %v1232
  %2103 = vmatpush.bf16.msra.mxu0 %v1226
  %2104 = vmatpush.bf16.msra.mxu0 %v1220
  %2105 = vmatpush.bf16.msra.mxu0 %v1214
  %2106 = vmatmul.bf16.gmra.mxu0 %v334
  %v2107 = vpop.f32.mrf.mxu0
  %v2108 = vadd.f32 %v317, %v2107
  %v2109 = vpop.f32.mrf.mxu0
  %2110 = vdwg.mxu0
  %2111 = vmatpush.bf16.msra.mxu0 %v1304
  %2112 = vmatpush.bf16.msra.mxu0 %v1298
  %2113 = vmatpush.bf16.msra.mxu0 %v1292
  %2114 = vmatpush.bf16.msra.mxu0 %v1286
  %2115 = vmatpush.bf16.msra.mxu0 %v1280
  %2116 = vmatpush.bf16.msra.mxu0 %v1274
  %2117 = vmatpush.bf16.msra.mxu0 %v1268
  %2118 = vmatpush.bf16.msra.mxu0 %v1262
  %2119 = vmatmul.bf16.gmra.mxu0 %v335
  %v2120 = vpop.f32.mrf.mxu0
  %v2121 = vadd.f32 %v2108, %v2120
  %v2122 = vpop.f32.mrf.mxu0
  %2123 = vdwg.mxu0
  %2124 = vmatpush.bf16.msra.mxu0 %v1352
  %2125 = vmatpush.bf16.msra.mxu0 %v1346
  %2126 = vmatpush.bf16.msra.mxu0 %v1340
  %2127 = vmatpush.bf16.msra.mxu0 %v1334
  %2128 = vmatpush.bf16.msra.mxu0 %v1328
  %2129 = vmatpush.bf16.msra.mxu0 %v1322
  %2130 = vmatpush.bf16.msra.mxu0 %v1316
  %2131 = vmatpush.bf16.msra.mxu0 %v1310
  %2132 = vmatmul.bf16.gmra.mxu0 %v336
  %v2133 = vpop.f32.mrf.mxu0
  %v2134 = vadd.f32 %v2121, %v2133
  %v2135 = vpop.f32.mrf.mxu0
  %2136 = vdwg.mxu0
  %2137 = vmatpush.bf16.msra.mxu0 %v1400
  %2138 = vmatpush.bf16.msra.mxu0 %v1394
  %2139 = vmatpush.bf16.msra.mxu0 %v1388
  %2140 = vmatpush.bf16.msra.mxu0 %v1382
  %2141 = vmatpush.bf16.msra.mxu0 %v1376
  %2142 = vmatpush.bf16.msra.mxu0 %v1370
  %2143 = vmatpush.bf16.msra.mxu0 %v1364
  %2144 = vmatpush.bf16.msra.mxu0 %v1358
  %2145 = vmatmul.bf16.gmra.mxu0 %v337
  %v2146 = vpop.f32.mrf.mxu0
  %v2147 = vadd.f32 %v2134, %v2146
  %v2148 = vpop.f32.mrf.mxu0
  %2149 = vdwg.mxu0
  %2150 = vmatpush.bf16.msra.mxu0 %v1448
  %2151 = vmatpush.bf16.msra.mxu0 %v1442
  %2152 = vmatpush.bf16.msra.mxu0 %v1436
  %2153 = vmatpush.bf16.msra.mxu0 %v1430
  %2154 = vmatpush.bf16.msra.mxu0 %v1424
  %2155 = vmatpush.bf16.msra.mxu0 %v1418
  %2156 = vmatpush.bf16.msra.mxu0 %v1412
  %2157 = vmatpush.bf16.msra.mxu0 %v1406
  %2158 = vmatmul.bf16.gmra.mxu0 %v338
  %v2159 = vpop.f32.mrf.mxu0
  %v2160 = vadd.f32 %v2147, %v2159
  %v2161 = vpop.f32.mrf.mxu0
  %2162 = vdwg.mxu0
  %2163 = vmatpush.bf16.msra.mxu0 %v1496
  %2164 = vmatpush.bf16.msra.mxu0 %v1490
  %2165 = vmatpush.bf16.msra.mxu0 %v1484
  %2166 = vmatpush.bf16.msra.mxu0 %v1478
  %2167 = vmatpush.bf16.msra.mxu0 %v1472
  %2168 = vmatpush.bf16.msra.mxu0 %v1466
  %2169 = vmatpush.bf16.msra.mxu0 %v1460
  %2170 = vmatpush.bf16.msra.mxu0 %v1454
  %2171 = vmatmul.bf16.gmra.mxu0 %v339
  %v2172 = vpop.f32.mrf.mxu0
  %v2173 = vadd.f32 %v2160, %v2172
  %v2174 = vpop.f32.mrf.mxu0
  %2175 = vdwg.mxu0
  %2176 = vmatpush.bf16.msra.mxu0 %v1257
  %2177 = vmatpush.bf16.msra.mxu0 %v1251
  %2178 = vmatpush.bf16.msra.mxu0 %v1245
  %2179 = vmatpush.bf16.msra.mxu0 %v1239
  %2180 = vmatpush.bf16.msra.mxu0 %v1233
  %2181 = vmatpush.bf16.msra.mxu0 %v1227
  %2182 = vmatpush.bf16.msra.mxu0 %v1221
  %2183 = vmatpush.bf16.msra.mxu0 %v1215
  %2184 = vmatmul.bf16.gmra.mxu0 %v334
  %v2185 = vpop.f32.mrf.mxu0
  %v2186 = vadd.f32 %v318, %v2185
  %v2187 = vpop.f32.mrf.mxu0
  %2188 = vdwg.mxu0
  %2189 = vmatpush.bf16.msra.mxu0 %v1305
  %2190 = vmatpush.bf16.msra.mxu0 %v1299
  %2191 = vmatpush.bf16.msra.mxu0 %v1293
  %2192 = vmatpush.bf16.msra.mxu0 %v1287
  %2193 = vmatpush.bf16.msra.mxu0 %v1281
  %2194 = vmatpush.bf16.msra.mxu0 %v1275
  %2195 = vmatpush.bf16.msra.mxu0 %v1269
  %2196 = vmatpush.bf16.msra.mxu0 %v1263
  %2197 = vmatmul.bf16.gmra.mxu0 %v335
  %v2198 = vpop.f32.mrf.mxu0
  %v2199 = vadd.f32 %v2186, %v2198
  %v2200 = vpop.f32.mrf.mxu0
  %2201 = vdwg.mxu0
  %2202 = vmatpush.bf16.msra.mxu0 %v1353
  %2203 = vmatpush.bf16.msra.mxu0 %v1347
  %2204 = vmatpush.bf16.msra.mxu0 %v1341
  %2205 = vmatpush.bf16.msra.mxu0 %v1335
  %2206 = vmatpush.bf16.msra.mxu0 %v1329
  %2207 = vmatpush.bf16.msra.mxu0 %v1323
  %2208 = vmatpush.bf16.msra.mxu0 %v1317
  %2209 = vmatpush.bf16.msra.mxu0 %v1311
  %2210 = vmatmul.bf16.gmra.mxu0 %v336
  %v2211 = vpop.f32.mrf.mxu0
  %v2212 = vadd.f32 %v2199, %v2211
  %v2213 = vpop.f32.mrf.mxu0
  %2214 = vdwg.mxu0
  %2215 = vmatpush.bf16.msra.mxu0 %v1401
  %2216 = vmatpush.bf16.msra.mxu0 %v1395
  %2217 = vmatpush.bf16.msra.mxu0 %v1389
  %2218 = vmatpush.bf16.msra.mxu0 %v1383
  %2219 = vmatpush.bf16.msra.mxu0 %v1377
  %2220 = vmatpush.bf16.msra.mxu0 %v1371
  %2221 = vmatpush.bf16.msra.mxu0 %v1365
  %2222 = vmatpush.bf16.msra.mxu0 %v1359
  %2223 = vmatmul.bf16.gmra.mxu0 %v337
  %v2224 = vpop.f32.mrf.mxu0
  %v2225 = vadd.f32 %v2212, %v2224
  %v2226 = vpop.f32.mrf.mxu0
  %2227 = vdwg.mxu0
  %2228 = vmatpush.bf16.msra.mxu0 %v1449
  %2229 = vmatpush.bf16.msra.mxu0 %v1443
  %2230 = vmatpush.bf16.msra.mxu0 %v1437
  %2231 = vmatpush.bf16.msra.mxu0 %v1431
  %2232 = vmatpush.bf16.msra.mxu0 %v1425
  %2233 = vmatpush.bf16.msra.mxu0 %v1419
  %2234 = vmatpush.bf16.msra.mxu0 %v1413
  %2235 = vmatpush.bf16.msra.mxu0 %v1407
  %2236 = vmatmul.bf16.gmra.mxu0 %v338
  %v2237 = vpop.f32.mrf.mxu0
  %v2238 = vadd.f32 %v2225, %v2237
  %v2239 = vpop.f32.mrf.mxu0
  %2240 = vdwg.mxu0
  %2241 = vmatpush.bf16.msra.mxu0 %v1497
  %2242 = vmatpush.bf16.msra.mxu0 %v1491
  %2243 = vmatpush.bf16.msra.mxu0 %v1485
  %2244 = vmatpush.bf16.msra.mxu0 %v1479
  %2245 = vmatpush.bf16.msra.mxu0 %v1473
  %2246 = vmatpush.bf16.msra.mxu0 %v1467
  %2247 = vmatpush.bf16.msra.mxu0 %v1461
  %2248 = vmatpush.bf16.msra.mxu0 %v1455
  %2249 = vmatmul.bf16.gmra.mxu0 %v339
  %v2250 = vpop.f32.mrf.mxu0
  %v2251 = vadd.f32 %v2238, %v2250
  %v2252 = vpop.f32.mrf.mxu0
  %2253 = vdwg.mxu0
  %v2254 = vtanh.pop %v1861
  %v2255 = vtanh.pop %v1939
  %v2256 = vtanh.pop %v2017
  %v2257 = vtanh.pop %v2095
  %v2258 = vtanh.pop %v2173
  %v2259 = vtanh.pop %v2251
  %v2260 = vpack.c.bf16 %v2254, %v2254
  %v2261 = vpack.c.bf16 %v2255, %v2255
  %v2262 = vpack.c.bf16 %v2256, %v2256
  %v2263 = vpack.c.bf16 %v2257, %v2257
  %v2264 = vpack.c.bf16 %v2258, %v2258
  %v2265 = vpack.c.bf16 %v2259, %v2259
  %v2266 = vld [vmem:[%s3] sm:$0xf]
  %v2267 = vld [vmem:[%s3 + $0x4] sm:$0xf]
  %v2268 = vld [vmem:[%s3 + $0x8] sm:$0xf]
  %v2269 = vld [vmem:[%s3 + $0xc] sm:$0xf]
  %v2270 = vld [vmem:[%s3 + $0x10] sm:$0xf]
  %v2271 = vld [vmem:[%s3 + $0x14] sm:$0xf]
  %v2272 = vld [vmem:[%s3 + $0x18] sm:$0xf]
  %v2273 = vld [vmem:[%s3 + $0x1c] sm:$0xf]
  %v2274 = vld [vmem:[%s3 + $0x20] sm:$0xf]
  %v2275 = vld [vmem:[%s3 + $0x24] sm:$0xf]
  %v2276 = vld [vmem:[%s3 + $0x28] sm:$0xf]
  %v2277 = vld [vmem:[%s3 + $0x2c] sm:$0xf]
  %v2278 = vld [vmem:[%s3 + $0x30] sm:$0xf]
  %v2279 = vld [vmem:[%s3 + $0x34] sm:$0xf]
  %v2280 = vld [vmem:[%s3 + $0x38] sm:$0xf]
  %v2281 = vld [vmem:[%s3 + $0x3c] sm:$0xf]
  %v2282 = vld [vmem:[%s3 + $0x40] sm:$0xf]
  %v2283 = vld [vmem:[%s3 + $0x44] sm:$0xf]
  %v2284 = vld [vmem:[%s3 + $0x48] sm:$0xf]
  %v2285 = vld [vmem:[%s3 + $0x4c] sm:$0xf]
  %v2286 = vld [vmem:[%s3 + $0x50] sm:$0xf]
  %v2287 = vld [vmem:[%s3 + $0x54] sm:$0xf]
  %v2288 = vld [vmem:[%s3 + $0x58] sm:$0xf]
  %v2289 = vld [vmem:[%s3 + $0x5c] sm:$0xf]
  %v2290 = vld [vmem:[%s3 + $0x60] sm:$0xf]
  %v2291 = vld [vmem:[%s3 + $0x64] sm:$0xf]
  %v2292 = vld [vmem:[%s3 + $0x68] sm:$0xf]
  %v2293 = vld [vmem:[%s3 + $0x6c] sm:$0xf]
  %v2294 = vld [vmem:[%s3 + $0x70] sm:$0xf]
  %v2295 = vld [vmem:[%s3 + $0x74] sm:$0xf]
  %v2296 = vld [vmem:[%s3 + $0x78] sm:$0xf]
  %v2297 = vld [vmem:[%s3 + $0x7c] sm:$0xf]
  %v2298 = vld [vmem:[%s3 + $0x80] sm:$0xf]
  %v2299 = vld [vmem:[%s3 + $0x84] sm:$0xf]
  %v2300 = vld [vmem:[%s3 + $0x88] sm:$0xf]
  %v2301 = vld [vmem:[%s3 + $0x8c] sm:$0xf]
  %v2302 = vld [vmem:[%s3 + $0x90] sm:$0xf]
  %v2303 = vld [vmem:[%s3 + $0x94] sm:$0xf]
  %v2304 = vld [vmem:[%s3 + $0x98] sm:$0xf]
  %v2305 = vld [vmem:[%s3 + $0x9c] sm:$0xf]
  %v2306 = vld [vmem:[%s3 + $0xa0] sm:$0xf]
  %v2307 = vld [vmem:[%s3 + $0xa4] sm:$0xf]
  %v2308 = vld [vmem:[%s3 + $0xa8] sm:$0xf]
  %v2309 = vld [vmem:[%s3 + $0xac] sm:$0xf]
  %v2310 = vld [vmem:[%s3 + $0xb0] sm:$0xf]
  %v2311 = vld [vmem:[%s3 + $0xb4] sm:$0xf]
  %v2312 = vld [vmem:[%s3 + $0xb8] sm:$0xf]
  %v2313 = vld [vmem:[%s3 + $0xbc] sm:$0xf]
  %v2314 = vld [vmem:[%s3 + $0xc0] sm:$0xf]
  %v2315 = vld [vmem:[%s3 + $0xc4] sm:$0xf]
  %v2316 = vld [vmem:[%s3 + $0xc8] sm:$0xf]
  %v2317 = vld [vmem:[%s3 + $0xcc] sm:$0xf]
  %v2318 = vld [vmem:[%s3 + $0xd0] sm:$0xf]
  %v2319 = vld [vmem:[%s3 + $0xd4] sm:$0xf]
  %v2320 = vld [vmem:[%s3 + $0xd8] sm:$0xf]
  %v2321 = vld [vmem:[%s3 + $0xdc] sm:$0xf]
  %v2322 = vld [vmem:[%s3 + $0xe0] sm:$0xf]
  %v2323 = vld [vmem:[%s3 + $0xe4] sm:$0xf]
  %v2324 = vld [vmem:[%s3 + $0xe8] sm:$0xf]
  %v2325 = vld [vmem:[%s3 + $0xec] sm:$0xf]
  %v2326 = vld [vmem:[%s3 + $0xf0] sm:$0xf]
  %v2327 = vld [vmem:[%s3 + $0xf4] sm:$0xf]
  %v2328 = vld [vmem:[%s3 + $0xf8] sm:$0xf]
  %v2329 = vld [vmem:[%s3 + $0xfc] sm:$0xf]
  %v2330 = vld [vmem:[%s3 + $0x100] sm:$0xf]
  %v2331 = vld [vmem:[%s3 + $0x104] sm:$0xf]
  %v2332 = vld [vmem:[%s3 + $0x108] sm:$0xf]
  %v2333 = vld [vmem:[%s3 + $0x10c] sm:$0xf]
  %v2334 = vld [vmem:[%s3 + $0x110] sm:$0xf]
  %v2335 = vld [vmem:[%s3 + $0x114] sm:$0xf]
  %v2336 = vld [vmem:[%s3 + $0x118] sm:$0xf]
  %v2337 = vld [vmem:[%s3 + $0x11c] sm:$0xf]
  %v2338 = vld [vmem:[%s3 + $0x120] sm:$0xf]
  %v2339 = vld [vmem:[%s3 + $0x124] sm:$0xf]
  %v2340 = vld [vmem:[%s3 + $0x128] sm:$0xf]
  %v2341 = vld [vmem:[%s3 + $0x12c] sm:$0xf]
  %v2342 = vld [vmem:[%s3 + $0x130] sm:$0xf]
  %v2343 = vld [vmem:[%s3 + $0x134] sm:$0xf]
  %v2344 = vld [vmem:[%s3 + $0x138] sm:$0xf]
  %v2345 = vld [vmem:[%s3 + $0x13c] sm:$0xf]
  %v2346 = vld [vmem:[%s3 + $0x140] sm:$0xf]
  %v2347 = vld [vmem:[%s3 + $0x144] sm:$0xf]
  %v2348 = vld [vmem:[%s3 + $0x148] sm:$0xf]
  %v2349 = vld [vmem:[%s3 + $0x14c] sm:$0xf]
  %v2350 = vld [vmem:[%s3 + $0x150] sm:$0xf]
  %v2351 = vld [vmem:[%s3 + $0x154] sm:$0xf]
  %v2352 = vld [vmem:[%s3 + $0x158] sm:$0xf]
  %v2353 = vld [vmem:[%s3 + $0x15c] sm:$0xf]
  %v2354 = vld [vmem:[%s3 + $0x160] sm:$0xf]
  %v2355 = vld [vmem:[%s3 + $0x164] sm:$0xf]
  %v2356 = vld [vmem:[%s3 + $0x168] sm:$0xf]
  %v2357 = vld [vmem:[%s3 + $0x16c] sm:$0xf]
  %v2358 = vld [vmem:[%s3 + $0x170] sm:$0xf]
  %v2359 = vld [vmem:[%s3 + $0x174] sm:$0xf]
  %v2360 = vld [vmem:[%s3 + $0x178] sm:$0xf]
  %v2361 = vld [vmem:[%s3 + $0x17c] sm:$0xf]
  %v2362 = vld [vmem:[%s4] sm:$0x1]
  %v2364 = vperm.slane %v2362, 0
  %v2462 = vunpack.c.l.b16 %v2266
  %v2463 = vunpack.c.l.b16 %v2267
  %v2464 = vunpack.c.l.b16 %v2268
  %v2465 = vunpack.c.l.b16 %v2269
  %v2466 = vunpack.c.l.b16 %v2270
  %v2467 = vunpack.c.l.b16 %v2271
  %v2468 = vunpack.c.l.b16 %v2272
  %v2469 = vunpack.c.l.b16 %v2273
  %v2470 = vunpack.c.l.b16 %v2274
  %v2471 = vunpack.c.l.b16 %v2275
  %v2472 = vunpack.c.l.b16 %v2276
  %v2473 = vunpack.c.l.b16 %v2277
  %v2474 = vunpack.c.l.b16 %v2278
  %v2475 = vunpack.c.l.b16 %v2279
  %v2476 = vunpack.c.l.b16 %v2280
  %v2477 = vunpack.c.l.b16 %v2281
  %v2478 = vunpack.c.l.b16 %v2282
  %v2479 = vunpack.c.l.b16 %v2283
  %v2480 = vunpack.c.l.b16 %v2284
  %v2481 = vunpack.c.l.b16 %v2285
  %v2482 = vunpack.c.l.b16 %v2286
  %v2483 = vunpack.c.l.b16 %v2287
  %v2484 = vunpack.c.l.b16 %v2288
  %v2485 = vunpack.c.l.b16 %v2289
  %v2486 = vunpack.c.l.b16 %v2290
  %v2487 = vunpack.c.l.b16 %v2291
  %v2488 = vunpack.c.l.b16 %v2292
  %v2489 = vunpack.c.l.b16 %v2293
  %v2490 = vunpack.c.l.b16 %v2294
  %v2491 = vunpack.c.l.b16 %v2295
  %v2492 = vunpack.c.l.b16 %v2296
  %v2493 = vunpack.c.l.b16 %v2297
  %v2494 = vunpack.c.l.b16 %v2298
  %v2495 = vunpack.c.l.b16 %v2299
  %v2496 = vunpack.c.l.b16 %v2300
  %v2497 = vunpack.c.l.b16 %v2301
  %v2498 = vunpack.c.l.b16 %v2302
  %v2499 = vunpack.c.l.b16 %v2303
  %v2500 = vunpack.c.l.b16 %v2304
  %v2501 = vunpack.c.l.b16 %v2305
  %v2502 = vunpack.c.l.b16 %v2306
  %v2503 = vunpack.c.l.b16 %v2307
  %v2504 = vunpack.c.l.b16 %v2308
  %v2505 = vunpack.c.l.b16 %v2309
  %v2506 = vunpack.c.l.b16 %v2310
  %v2507 = vunpack.c.l.b16 %v2311
  %v2508 = vunpack.c.l.b16 %v2312
  %v2509 = vunpack.c.l.b16 %v2313
  %v2510 = vunpack.c.l.b16 %v2314
  %v2511 = vunpack.c.l.b16 %v2315
  %v2512 = vunpack.c.l.b16 %v2316
  %v2513 = vunpack.c.l.b16 %v2317
  %v2514 = vunpack.c.l.b16 %v2318
  %v2515 = vunpack.c.l.b16 %v2319
  %v2516 = vunpack.c.l.b16 %v2320
  %v2517 = vunpack.c.l.b16 %v2321
  %v2518 = vunpack.c.l.b16 %v2322
  %v2519 = vunpack.c.l.b16 %v2323
  %v2520 = vunpack.c.l.b16 %v2324
  %v2521 = vunpack.c.l.b16 %v2325
  %v2522 = vunpack.c.l.b16 %v2326
  %v2523 = vunpack.c.l.b16 %v2327
  %v2524 = vunpack.c.l.b16 %v2328
  %v2525 = vunpack.c.l.b16 %v2329
  %v2526 = vunpack.c.l.b16 %v2330
  %v2527 = vunpack.c.l.b16 %v2331
  %v2528 = vunpack.c.l.b16 %v2332
  %v2529 = vunpack.c.l.b16 %v2333
  %v2530 = vunpack.c.l.b16 %v2334
  %v2531 = vunpack.c.l.b16 %v2335
  %v2532 = vunpack.c.l.b16 %v2336
  %v2533 = vunpack.c.l.b16 %v2337
  %v2534 = vunpack.c.l.b16 %v2338
  %v2535 = vunpack.c.l.b16 %v2339
  %v2536 = vunpack.c.l.b16 %v2340
  %v2537 = vunpack.c.l.b16 %v2341
  %v2538 = vunpack.c.l.b16 %v2342
  %v2539 = vunpack.c.l.b16 %v2343
  %v2540 = vunpack.c.l.b16 %v2344
  %v2541 = vunpack.c.l.b16 %v2345
  %v2542 = vunpack.c.l.b16 %v2346
  %v2543 = vunpack.c.l.b16 %v2347
  %v2544 = vunpack.c.l.b16 %v2348
  %v2545 = vunpack.c.l.b16 %v2349
  %v2546 = vunpack.c.l.b16 %v2350
  %v2547 = vunpack.c.l.b16 %v2351
  %v2548 = vunpack.c.l.b16 %v2352
  %v2549 = vunpack.c.l.b16 %v2353
  %v2550 = vunpack.c.l.b16 %v2354
  %v2551 = vunpack.c.l.b16 %v2355
  %v2552 = vunpack.c.l.b16 %v2356
  %v2553 = vunpack.c.l.b16 %v2357
  %v2554 = vunpack.c.l.b16 %v2358
  %v2555 = vunpack.c.l.b16 %v2359
  %v2556 = vunpack.c.l.b16 %v2360
  %v2557 = vunpack.c.l.b16 %v2361
  %v2558 = vpack.c.b16 %v2463, %v2462
  %v2559 = vpack.c.b16 %v2465, %v2464
  %v2560 = vpack.c.b16 %v2467, %v2466
  %v2561 = vpack.c.b16 %v2469, %v2468
  %v2562 = vpack.c.b16 %v2471, %v2470
  %v2563 = vpack.c.b16 %v2473, %v2472
  %v2564 = vpack.c.b16 %v2475, %v2474
  %v2565 = vpack.c.b16 %v2477, %v2476
  %v2566 = vpack.c.b16 %v2479, %v2478
  %v2567 = vpack.c.b16 %v2481, %v2480
  %v2568 = vpack.c.b16 %v2483, %v2482
  %v2569 = vpack.c.b16 %v2485, %v2484
  %v2570 = vpack.c.b16 %v2487, %v2486
  %v2571 = vpack.c.b16 %v2489, %v2488
  %v2572 = vpack.c.b16 %v2491, %v2490
  %v2573 = vpack.c.b16 %v2493, %v2492
  %v2574 = vpack.c.b16 %v2495, %v2494
  %v2575 = vpack.c.b16 %v2497, %v2496
  %v2576 = vpack.c.b16 %v2499, %v2498
  %v2577 = vpack.c.b16 %v2501, %v2500
  %v2578 = vpack.c.b16 %v2503, %v2502
  %v2579 = vpack.c.b16 %v2505, %v2504
  %v2580 = vpack.c.b16 %v2507, %v2506
  %v2581 = vpack.c.b16 %v2509, %v2508
  %v2582 = vpack.c.b16 %v2511, %v2510
  %v2583 = vpack.c.b16 %v2513, %v2512
  %v2584 = vpack.c.b16 %v2515, %v2514
  %v2585 = vpack.c.b16 %v2517, %v2516
  %v2586 = vpack.c.b16 %v2519, %v2518
  %v2587 = vpack.c.b16 %v2521, %v2520
  %v2588 = vpack.c.b16 %v2523, %v2522
  %v2589 = vpack.c.b16 %v2525, %v2524
  %v2590 = vpack.c.b16 %v2527, %v2526
  %v2591 = vpack.c.b16 %v2529, %v2528
  %v2592 = vpack.c.b16 %v2531, %v2530
  %v2593 = vpack.c.b16 %v2533, %v2532
  %v2594 = vpack.c.b16 %v2535, %v2534
  %v2595 = vpack.c.b16 %v2537, %v2536
  %v2596 = vpack.c.b16 %v2539, %v2538
  %v2597 = vpack.c.b16 %v2541, %v2540
  %v2598 = vpack.c.b16 %v2543, %v2542
  %v2599 = vpack.c.b16 %v2545, %v2544
  %v2600 = vpack.c.b16 %v2547, %v2546
  %v2601 = vpack.c.b16 %v2549, %v2548
  %v2602 = vpack.c.b16 %v2551, %v2550
  %v2603 = vpack.c.b16 %v2553, %v2552
  %v2604 = vpack.c.b16 %v2555, %v2554
  %v2605 = vpack.c.b16 %v2557, %v2556
  %2654 = vmatpush.bf16.msra.mxu0 %v2565
  %2655 = vmatpush.bf16.msra.mxu0 %v2564
  %2656 = vmatpush.bf16.msra.mxu0 %v2563
  %2657 = vmatpush.bf16.msra.mxu0 %v2562
  %2658 = vmatpush.bf16.msra.mxu0 %v2561
  %2659 = vmatpush.bf16.msra.mxu0 %v2560
  %2660 = vmatpush.bf16.msra.mxu0 %v2559
  %2661 = vmatpush.bf16.msra.mxu0 %v2558
  %2662 = vmatmul.bf16.gmra.mxu0 %v2260
  %v2663 = vpop.f32.mrf.mxu0
  %v2664 = vadd.f32 %v2364, %v2663
  %v2665 = vpop.f32.mrf.mxu0
  %2666 = vdwg.mxu0
  %2667 = vmatpush.bf16.msra.mxu0 %v2573
  %2668 = vmatpush.bf16.msra.mxu0 %v2572
  %2669 = vmatpush.bf16.msra.mxu0 %v2571
  %2670 = vmatpush.bf16.msra.mxu0 %v2570
  %2671 = vmatpush.bf16.msra.mxu0 %v2569
  %2672 = vmatpush.bf16.msra.mxu0 %v2568
  %2673 = vmatpush.bf16.msra.mxu0 %v2567
  %2674 = vmatpush.bf16.msra.mxu0 %v2566
  %2675 = vmatmul.bf16.gmra.mxu0 %v2261
  %v2676 = vpop.f32.mrf.mxu0
  %v2677 = vadd.f32 %v2664, %v2676
  %v2678 = vpop.f32.mrf.mxu0
  %2679 = vdwg.mxu0
  %2680 = vmatpush.bf16.msra.mxu0 %v2581
  %2681 = vmatpush.bf16.msra.mxu0 %v2580
  %2682 = vmatpush.bf16.msra.mxu0 %v2579
  %2683 = vmatpush.bf16.msra.mxu0 %v2578
  %2684 = vmatpush.bf16.msra.mxu0 %v2577
  %2685 = vmatpush.bf16.msra.mxu0 %v2576
  %2686 = vmatpush.bf16.msra.mxu0 %v2575
  %2687 = vmatpush.bf16.msra.mxu0 %v2574
  %2688 = vmatmul.bf16.gmra.mxu0 %v2262
  %v2689 = vpop.f32.mrf.mxu0
  %v2690 = vadd.f32 %v2677, %v2689
  %v2691 = vpop.f32.mrf.mxu0
  %2692 = vdwg.mxu0
  %2693 = vmatpush.bf16.msra.mxu0 %v2589
  %2694 = vmatpush.bf16.msra.mxu0 %v2588
  %2695 = vmatpush.bf16.msra.mxu0 %v2587
  %2696 = vmatpush.bf16.msra.mxu0 %v2586
  %2697 = vmatpush.bf16.msra.mxu0 %v2585
  %2698 = vmatpush.bf16.msra.mxu0 %v2584
  %2699 = vmatpush.bf16.msra.mxu0 %v2583
  %2700 = vmatpush.bf16.msra.mxu0 %v2582
  %2701 = vmatmul.bf16.gmra.mxu0 %v2263
  %v2702 = vpop.f32.mrf.mxu0
  %v2703 = vadd.f32 %v2690, %v2702
  %v2704 = vpop.f32.mrf.mxu0
  %2705 = vdwg.mxu0
  %2706 = vmatpush.bf16.msra.mxu0 %v2597
  %2707 = vmatpush.bf16.msra.mxu0 %v2596
  %2708 = vmatpush.bf16.msra.mxu0 %v2595
  %2709 = vmatpush.bf16.msra.mxu0 %v2594
  %2710 = vmatpush.bf16.msra.mxu0 %v2593
  %2711 = vmatpush.bf16.msra.mxu0 %v2592
  %2712 = vmatpush.bf16.msra.mxu0 %v2591
  %2713 = vmatpush.bf16.msra.mxu0 %v2590
  %2714 = vmatmul.bf16.gmra.mxu0 %v2264
  %v2715 = vpop.f32.mrf.mxu0
  %v2716 = vadd.f32 %v2703, %v2715
  %v2717 = vpop.f32.mrf.mxu0
  %2718 = vdwg.mxu0
  %2719 = vmatpush.bf16.msra.mxu0 %v2605
  %2720 = vmatpush.bf16.msra.mxu0 %v2604
  %2721 = vmatpush.bf16.msra.mxu0 %v2603
  %2722 = vmatpush.bf16.msra.mxu0 %v2602
  %2723 = vmatpush.bf16.msra.mxu0 %v2601
  %2724 = vmatpush.bf16.msra.mxu0 %v2600
  %2725 = vmatpush.bf16.msra.mxu0 %v2599
  %2726 = vmatpush.bf16.msra.mxu0 %v2598
  %2727 = vmatmul.bf16.gmra.mxu0 %v2265
  %v2728 = vpop.f32.mrf.mxu0
  %v2729 = vadd.f32 %v2716, %v2728
  %v2730 = vpop.f32.mrf.mxu0
  %2731 = vdwg.mxu0
  %v2732 = vmax.f32 %v2729, 0.0
  %2733 = vst [vmem:[%s5] sm:$0xff] %v2732
  // Predicated region
  $region22: #{text_classifier_forward.1} parent=0 // pred_check
    _
  $region23: #{text_classifier_forward.1} parent=0 // pred_check_branch
    %2735 = sbr.rel (0) target = $region25
  $region24: #{text_classifier_forward.1} parent=0 // pred_region
    _
  $region25: #{text_classifier_forward.1} parent=0 // pred_fallthru
    _
  // Predicated region
  $region26: #{text_classifier_forward.1} parent=0 // pred_check
    _
  $region27: #{text_classifier_forward.1} parent=0 // pred_check_branch
    %2737 = sbr.rel (0) target = $region29
  $region28: #{text_classifier_forward.1} parent=0 // pred_region
    _
  $region29: #{text_classifier_forward.1} parent=0 // pred_fallthru
    _

</llo_original>
